<compile_context>
chip_gen: v7x
topology: tpu7x:2x2x1
jax: 0.10.0
libtpu: 0.0.40
codegen_flags: <defaults>
</compile_context>

<pallas_src>
import functools

import numpy as np
import jax
import jax.numpy as jnp
from jax.experimental import pallas as pl
from jax.experimental.pallas import tpu as pltpu

EPS = 1e-5  # nn.BatchNorm3d default eps


def _parallel(n_axes):
    return pltpu.CompilerParams(dimension_semantics=("parallel",) * n_axes)


def _stats(y):
    # Per-channel partial [sum, sum of squares] over the lane (spatial) axis.
    return jnp.concatenate([jnp.sum(y, axis=1, keepdims=True),
                            jnp.sum(y * y, axis=1, keepdims=True)], axis=1)


# --------------------------------------------------------------------------
# Kernels
# --------------------------------------------------------------------------
def _pconv_kernel(prenorm, x_ref, w_ref, *refs):
    """1x1x1 Conv3d on one (n, d) plane (+ optional fused BN+ReLU of the input).

    x_ref: (1, Cin, HW)   activations (matmul dtype; f32 pre-BN if prenorm)
    w_ref: (Cout, Cin)    conv weight (matmul dtype)
    [isc_ref, ish_ref: (Cin, 1) f32 BN scale/shift applied to x before the dot]
    y_ref: (1, Cout, HW)  f32 pre-BN conv output
    s_ref: (1, Cout, 2)   f32 per-plane [sum, sumsq]
    """
    if prenorm:
        isc_ref, ish_ref, y_ref, s_ref = refs
    else:
        y_ref, s_ref = refs
    x = x_ref[0]
    if prenorm:  # BN + ReLU of the previous stage, fused (avoids an HBM trip)
        x = jnp.maximum(x.astype(jnp.float32) * isc_ref[...] + ish_ref[...], 0.0)
    y = jnp.dot(w_ref[...], x.astype(w_ref.dtype),
                preferred_element_type=jnp.float32)
    y_ref[0] = y
    s_ref[0] = _stats(y)


def _conv3_kernel(row_stride, p0_ref, p1_ref, p2_ref, wt_ref, y_ref, s_ref):
    """3x3x3 Conv3d (padding=1) for one output (n, d) plane.

    p{k}_ref: (1, 1, 3, Cin, (H+2)*W)  W-pre-shifted padded planes at depth d+k
    wt_ref:   (Cout, 27*Cin)           all taps folded into one matmul
    y_ref:    (1, 1, Cout, H*W)        f32 pre-BN conv output
    s_ref:    (1, 1, Cout, 2)          f32 per-plane [sum, sumsq]
    """
    hw = y_ref.shape[3]
    cols = []
    for p_ref in (p0_ref, p1_ref, p2_ref):          # kd = 0, 1, 2
        for kh in range(3):
            start = kh * row_stride                  # contiguous lane slice
            for kw in range(3):
                cols.append(p_ref[0, 0, kw, :, start:start + hw])
    patches = jnp.concatenate(cols, axis=0)          # (27*Cin, H*W)
    y = jnp.dot(wt_ref[...], patches.astype(wt_ref.dtype),
                preferred_element_type=jnp.float32)  # single K = 27*Cin dot
    y_ref[0, 0] = y
    s_ref[0, 0] = _stats(y)


def _norm_split_kernel(f1, y_ref, sc_ref, sh_ref, a_ref, id_ref):
    """Normalize the fused stage-1 output and split it.

    Rows [:f1] -> branch activation a1 (ReLU), rows [f1:] -> shortcut identity.
    """
    o = y_ref[0] * sc_ref[...] + sh_ref[...]
    a_ref[0] = jnp.maximum(o[:f1], 0.0).astype(a_ref.dtype)
    id_ref[0] = o[f1:].astype(id_ref.dtype)


def _norm_residual_kernel(y_ref, sc_ref, sh_ref, r_ref, o_ref):
    """Final BN normalize + residual add:  out = bn(y) + identity."""
    o_ref[0] = (y_ref[0] * sc_ref[...] + sh_ref[...] + r_ref[0]).astype(o_ref.dtype)


# --------------------------------------------------------------------------
# pallas_call wrappers
# --------------------------------------------------------------------------
def _pointwise_pass(x, w, prenorm_scale=None, prenorm_shift=None):
    """Per-plane 1x1x1 conv (+ optional fused BN+ReLU of the input) + stats."""
    nd, cin, hw = x.shape
    cout = w.shape[0]
    prenorm = prenorm_scale is not None
    inputs = [x, w]
    in_specs = [pl.BlockSpec((1, cin, hw), lambda i: (i, 0, 0)),
                pl.BlockSpec((cout, cin), lambda i: (0, 0))]
    if prenorm:
        inputs += [prenorm_scale, prenorm_shift]
        in_specs += [pl.BlockSpec((cin, 1), lambda i: (0, 0)),
                     pl.BlockSpec((cin, 1), lambda i: (0, 0))]
    return pl.pallas_call(
        functools.partial(_pconv_kernel, prenorm),
        grid=(nd,),
        in_specs=in_specs,
        out_specs=[pl.BlockSpec((1, cout, hw), lambda i: (i, 0, 0)),
                   pl.BlockSpec((1, cout, 2), lambda i: (i, 0, 0))],
        out_shape=[jax.ShapeDtypeStruct((nd, cout, hw), jnp.float32),
                   jax.ShapeDtypeStruct((nd, cout, 2), jnp.float32)],
        compiler_params=_parallel(1),
    )(*inputs)


def _conv3_pass(a_var, w_folded, h, w):
    """3x3x3 conv; the D halo comes from re-reading the padded activations at
    depths d, d+1, d+2 via three BlockSpecs over the same array."""
    n, dp2, _, cin, hpw = a_var.shape            # hpw == (H+2) * W
    d = dp2 - 2
    hw = h * w
    cout = w_folded.shape[0]

    def halo_spec(kd):
        return pl.BlockSpec((1, 1, 3, cin, hpw),
                            lambda ni, di, kd=kd: (ni, di + kd, 0, 0, 0))

    return pl.pallas_call(
        functools.partial(_conv3_kernel, w),
        grid=(n, d),
        in_specs=[halo_spec(0), halo_spec(1), halo_spec(2),
                  pl.BlockSpec((cout, 27 * cin), lambda ni, di: (0, 0))],
        out_specs=[pl.BlockSpec((1, 1, cout, hw), lambda ni, di: (ni, di, 0, 0)),
                   pl.BlockSpec((1, 1, cout, 2), lambda ni, di: (ni, di, 0, 0))],
        out_shape=[jax.ShapeDtypeStruct((n, d, cout, hw), jnp.float32),
                   jax.ShapeDtypeStruct((n, d, cout, 2), jnp.float32)],
        compiler_params=_parallel(2),
    )(a_var, a_var, a_var, w_folded)


def _norm_split_pass(y, scale, shift, f1, a_dtype):
    nd, c, hw = y.shape
    f2 = c - f1
    return pl.pallas_call(
        functools.partial(_norm_split_kernel, f1),
        grid=(nd,),
        in_specs=[pl.BlockSpec((1, c, hw), lambda i: (i, 0, 0)),
                  pl.BlockSpec((c, 1), lambda i: (0, 0)),
                  pl.BlockSpec((c, 1), lambda i: (0, 0))],
        out_specs=[pl.BlockSpec((1, f1, hw), lambda i: (i, 0, 0)),
                   pl.BlockSpec((1, f2, hw), lambda i: (i, 0, 0))],
        out_shape=[jax.ShapeDtypeStruct((nd, f1, hw), a_dtype),
                   jax.ShapeDtypeStruct((nd, f2, hw), jnp.float32)],
        compiler_params=_parallel(1),
    )(y, scale, shift)


def _norm_residual_pass(y, scale, shift, residual):
    nd, c, hw = y.shape
    return pl.pallas_call(
        _norm_residual_kernel,
        grid=(nd,),
        in_specs=[pl.BlockSpec((1, c, hw), lambda i: (i, 0, 0)),
                  pl.BlockSpec((c, 1), lambda i: (0, 0)),
                  pl.BlockSpec((c, 1), lambda i: (0, 0)),
                  pl.BlockSpec((1, c, hw), lambda i: (i, 0, 0))],
        out_specs=pl.BlockSpec((1, c, hw), lambda i: (i, 0, 0)),
        out_shape=jax.ShapeDtypeStruct((nd, c, hw), jnp.float32),
        compiler_params=_parallel(1),
    )(y, scale, shift, residual)


def _bn_scale_shift(partial_stats, count, gamma, beta):
    """Reduce per-plane [sum, sumsq] partials -> per-channel BN scale/shift.

    Training-mode BatchNorm3d (biased batch variance).  Partials are f32 and
    summed hierarchically (per plane, then across planes), keeping the
    E[y^2] - E[y]^2 cancellation well below the test tolerance.
    """
    s = partial_stats.reshape(-1, partial_stats.shape[-2], 2).sum(axis=0)
    mean = s[:, 0] / count
    var = jnp.maximum(s[:, 1] / count - mean * mean, 0.0)
    scale = gamma * jax.lax.rsqrt(var + EPS)
    shift = beta - mean * scale
    return (scale.reshape(-1, 1).astype(jnp.float32),
            shift.reshape(-1, 1).astype(jnp.float32))


# --------------------------------------------------------------------------
# Parameters + forward pass
# --------------------------------------------------------------------------
def init_params(key, in_channels, f1, f2):
    ks = jax.random.split(key, 4)
    p = {}
    # Conv3d weights (bias=False), PyTorch layouts:
    #   1x1x1 conv -> (Cout, Cin);  3x3x3 conv -> (Cout, Cin, kd, kh, kw)
    p["w1"] = jax.random.normal(ks[0], (f1, in_channels), jnp.float32) * 0.1
    p["w2"] = jax.random.normal(ks[1], (f1, f1, 3, 3, 3), jnp.float32) * 0.05
    p["w3"] = jax.random.normal(ks[2], (f2, f1), jnp.float32) * 0.1
    p["ws"] = jax.random.normal(ks[3], (f2, in_channels), jnp.float32) * 0.1
    # BatchNorm3d default init: gamma = 1, beta = 0.
    for name, c in (("1", f1), ("2", f1), ("3", f2), ("s", f2)):
        p["g" + name] = jnp.ones((c,), jnp.float32)
        p["b" + name] = jnp.zeros((c,), jnp.float32)
    return p


@functools.partial(jax.jit, static_argnames=("matmul_dtype",))
def residual_identity_block(x_ncdhw, p, matmul_dtype=jnp.bfloat16):
    """Pallas implementation of ResidualIdentityBlock.forward (NCDHW in/out)."""
    N, C, D, H, W = x_ncdhw.shape
    f1 = p["w1"].shape[0]
    f2 = p["w3"].shape[0]
    ND, HW, M = N * D, H * W, N * D * H * W

    # NCDHW -> (N*D, C, H*W): channels on sublanes, spatial plane on lanes.
    x = jnp.transpose(x_ncdhw, (0, 2, 1, 3, 4)).reshape(ND, C, HW)
    x = x.astype(matmul_dtype)

    # ---- stage 1: fused [branch 1x1 conv | shortcut 1x1 conv] + BN partials.
    w_cat = jnp.concatenate([p["w1"], p["ws"]], axis=0).astype(matmul_dtype)
    y1, s1 = _pointwise_pass(x, w_cat)
    sc1, sh1 = _bn_scale_shift(
        s1, M, jnp.concatenate([p["g1"], p["gs"]]),
        jnp.concatenate([p["b1"], p["bs"]]))
    a1, identity = _norm_split_pass(y1, sc1, sh1, f1, matmul_dtype)

    # ---- stage 2: 3x3x3 conv (single K = 27*f1 matmul per plane) + partials.
    a1_pad = jnp.pad(a1.reshape(N, D, f1, H, W),
                     ((0, 0), (1, 1), (0, 0), (1, 1), (1, 1)))
    # Pre-shift along W (kw = 0, 1, 2) and flatten (H+2, W) so the kernel only
    # needs contiguous lane slices to build the patch matrix.
    a1_var = jnp.stack([a1_pad[..., kw:kw + W] for kw in range(3)], axis=2)
    a1_var = a1_var.reshape(N, D + 2, 3, f1, (H + 2) * W)
    w2_folded = jnp.transpose(p["w2"], (0, 2, 3, 4, 1)).reshape(f1, 27 * f1)
    y2, s2 = _conv3_pass(a1_var, w2_folded.astype(matmul_dtype), H, W)
    sc2, sh2 = _bn_scale_shift(s2, M, p["g2"], p["b2"])

    # ---- stage 3: BN+ReLU of y2 fused into the final 1x1 conv + partials.
    y3, s3 = _pointwise_pass(y2.reshape(ND, f1, HW),
                             p["w3"].astype(matmul_dtype),
                             prenorm_scale=sc2, prenorm_shift=sh2)
    sc3, sh3 = _bn_scale_shift(s3, M, p["g3"], p["b3"])

    # ---- final BN + residual add.
    out = _norm_residual_pass(y3, sc3, sh3, identity)          # (ND, f2, HW)
    return jnp.transpose(out.reshape(N, D, f2, H, W), (0, 2, 1, 3, 4))


# --------------------------------------------------------------------------
# Pure-JAX reference (sanity check only)
# --------------------------------------------------------------------------
def _bn_train_ref(y, gamma, beta):
    mean = jnp.mean(y, axis=(0, 2, 3, 4), keepdims=True)
    var = jnp.mean((y - mean) ** 2, axis=(0, 2, 3, 4), keepdims=True)
    g = gamma.reshape(1, -1, 1, 1, 1)
    b = beta.reshape(1, -1, 1, 1, 1)
    return (y - mean) * jax.lax.rsqrt(var + EPS) * g + b


def reference(x_ncdhw, p, matmul_dtype=None):
    """If matmul_dtype is set, conv operands are quantized to that dtype
    (mirroring what the kernels feed the MXU) and accumulated in f32."""
    if matmul_dtype is None:
        q = lambda a: a
    else:
        q = lambda a: a.astype(matmul_dtype).astype(jnp.float32)

    def conv1(a, w):
        return jnp.einsum("ncdhw,oc->nodhw", q(a), q(w))

    def conv3(a, w):
        return jax.lax.conv_general_dilated(
            q(a), q(w), window_strides=(1, 1, 1),
            padding=((1, 1), (1, 1), (1, 1)),
            dimension_numbers=("NCDHW", "OIDHW", "NCDHW"))

    ident = _bn_train_ref(conv1(x_ncdhw, p["ws"]), p["gs"], p["bs"])
    a1 = jnp.maximum(_bn_train_ref(conv1(x_ncdhw, p["w1"]), p["g1"], p["b1"]), 0.0)
    a2 = jnp.maximum(_bn_train_ref(conv3(a1, p["w2"]), p["g2"], p["b2"]), 0.0)
    return _bn_train_ref(conv1(a2, p["w3"]), p["g3"], p["b3"]) + ident


if __name__ == "__main__":
    key = jax.random.PRNGKey(0)
    kx, kp = jax.random.split(key)
    N, C, D, H, W = 2, 4, 4, 8, 8          # NCDHW input, small shapes
    f1, f2 = 8, 16
    x = jax.random.normal(kx, (N, C, D, H, W), jnp.float32)
    params = init_params(kp, C, f1, f2)

    # f32 MXU operands: faithful to the PyTorch module's f32 math.
    out_f32 = jax.block_until_ready(
        residual_identity_block(x, params, matmul_dtype=jnp.float32))
    assert out_f32.shape == (N, f2, D, H, W), out_f32.shape
    np.testing.assert_allclose(np.asarray(out_f32),
                               np.asarray(reference(x, params)),
                               rtol=2e-3, atol=2e-3)

    # bf16 MXU operands (default fast path): checked against a reference that
    # quantizes the conv operands the same way (BN still in f32).
    out_bf16 = jax.block_until_ready(residual_identity_block(x, params))
    np.testing.assert_allclose(
        np.asarray(out_bf16),
        np.asarray(reference(x, params, matmul_dtype=jnp.bfloat16)),
        rtol=1e-2, atol=1e-2)

    print("KERNEL_OK")
</pallas_src>

<mosaic_0001>
module attributes {stable_mosaic.version = 11 : i64} {
  func.func @_pconv_kernel(%arg0: i32, %arg1: memref<1x4x64xf32, #tpu.memory_space<vmem>>, %arg2: memref<24x4xf32, #tpu.memory_space<vmem>>, %arg3: memref<1x24x64xf32, #tpu.memory_space<vmem>>, %arg4: memref<1x24x2xf32, #tpu.memory_space<vmem>>) attributes {dimension_semantics = [#tpu.dimension_semantics<parallel>], iteration_bounds = array<i64: 8>, scalar_prefetch = 0 : i64, scratch_operands = 0 : i64, tpu.core_type = #tpu.core_type<tc>, window_params = [{transform_indices = @transform_0, window_bounds = array<i64: 1, 4, 64>}, {pipeline_mode = #tpu.pipeline_mode<synchronous>, transform_indices = @transform_1, window_bounds = array<i64: 24, 4>}, {transform_indices = @transform_2, window_bounds = array<i64: 1, 24, 64>}, {transform_indices = @transform_3, window_bounds = array<i64: 1, 24, 2>}]} {
    %c0 = arith.constant 0 : index
    %c0_0 = arith.constant 0 : index
    %c0_1 = arith.constant 0 : index
    %0 = vector.load %arg1[%c0, %c0_0, %c0_1] : memref<1x4x64xf32, #tpu.memory_space<vmem>>, vector<1x4x64xf32>
    %1 = vector.shape_cast %0 : vector<1x4x64xf32> to vector<4x64xf32>
    %c0_2 = arith.constant 0 : index
    %c0_3 = arith.constant 0 : index
    %2 = vector.load %arg2[%c0_2, %c0_3] : memref<24x4xf32, #tpu.memory_space<vmem>>, vector<24x4xf32>
    %cst = arith.constant dense<0.000000e+00> : vector<24x64xf32>
    %3 = tpu.matmul %2, %1, %cst {dimension_numbers = #tpu.dot_dimension_numbers<[1], [0], [0], [1], [0, 0, 1, 1], [], []>} : vector<24x4xf32>, vector<4x64xf32>, vector<24x64xf32> -> vector<24x64xf32>
    %c0_4 = arith.constant 0 : index
    %c0_5 = arith.constant 0 : index
    %c0_6 = arith.constant 0 : index
    %4 = vector.load %arg3[%c0_4, %c0_5, %c0_6] : memref<1x24x64xf32, #tpu.memory_space<vmem>>, vector<1x24x64xf32>
    %5 = vector.shape_cast %4 : vector<1x24x64xf32> to vector<24x64xf32>
    %6 = vector.shape_cast %3 : vector<24x64xf32> to vector<1x24x64xf32>
    tpu.vector_store %arg3[%c0_4, %c0_5, %c0_6], %6 {strides = array<i32>} : memref<1x24x64xf32, #tpu.memory_space<vmem>>, vector<1x24x64xf32>,
    %cst_7 = arith.constant dense<0.000000e+00> : vector<24xf32>
    %7 = vector.multi_reduction <add>, %3, %cst_7 [1] : vector<24x64xf32> to vector<24xf32>
    %8 = vector.shape_cast %7 : vector<24xf32> to vector<24x1xf32>
    %9 = arith.mulf %3, %3 : vector<24x64xf32>
    %cst_8 = arith.constant dense<0.000000e+00> : vector<24xf32>
    %10 = vector.multi_reduction <add>, %9, %cst_8 [1] : vector<24x64xf32> to vector<24xf32>
    %11 = vector.shape_cast %10 : vector<24xf32> to vector<24x1xf32>
    %12 = tpu.concatenate %8, %11 in 1 : vector<24x1xf32>, vector<24x1xf32> -> vector<24x2xf32>
    %c0_9 = arith.constant 0 : index
    %c0_10 = arith.constant 0 : index
    %c0_11 = arith.constant 0 : index
    %13 = vector.load %arg4[%c0_9, %c0_10, %c0_11] : memref<1x24x2xf32, #tpu.memory_space<vmem>>, vector<1x24x2xf32>
    %14 = vector.shape_cast %13 : vector<1x24x2xf32> to vector<24x2xf32>
    %15 = vector.shape_cast %12 : vector<24x2xf32> to vector<1x24x2xf32>
    tpu.vector_store %arg4[%c0_9, %c0_10, %c0_11], %15 {strides = array<i32>} : memref<1x24x2xf32, #tpu.memory_space<vmem>>, vector<1x24x2xf32>,
    return
  }
  func.func @transform_0(%arg0: i32) -> (i32, i32, i32) {
    %c0_i32 = arith.constant 0 : i32
    %c0_i32_0 = arith.constant 0 : i32
    %c0_i32_1 = arith.constant 0 : i32
    return %arg0, %c0_i32, %c0_i32_0 : i32, i32, i32
  }
  func.func @transform_1(%arg0: i32) -> (i32, i32) {
    %c0_i32 = arith.constant 0 : i32
    %c0_i32_0 = arith.constant 0 : i32
    %c0_i32_1 = arith.constant 0 : i32
    return %c0_i32, %c0_i32_0 : i32, i32
  }
  func.func @transform_2(%arg0: i32) -> (i32, i32, i32) {
    %c0_i32 = arith.constant 0 : i32
    %c0_i32_0 = arith.constant 0 : i32
    %c0_i32_1 = arith.constant 0 : i32
    return %arg0, %c0_i32, %c0_i32_0 : i32, i32, i32
  }
  func.func @transform_3(%arg0: i32) -> (i32, i32, i32) {
    %c0_i32 = arith.constant 0 : i32
    %c0_i32_0 = arith.constant 0 : i32
    %c0_i32_1 = arith.constant 0 : i32
    return %arg0, %c0_i32, %c0_i32_0 : i32, i32, i32
  }
}

module attributes {stable_mosaic.version = 11 : i64} {
  func.func @_norm_split_kernel(%arg0: i32, %arg1: memref<1x24x64xf32, #tpu.memory_space<vmem>>, %arg2: memref<24x1xf32, #tpu.memory_space<vmem>>, %arg3: memref<24x1xf32, #tpu.memory_space<vmem>>, %arg4: memref<1x8x64xf32, #tpu.memory_space<vmem>>, %arg5: memref<1x16x64xf32, #tpu.memory_space<vmem>>) attributes {dimension_semantics = [#tpu.dimension_semantics<parallel>], iteration_bounds = array<i64: 8>, scalar_prefetch = 0 : i64, scratch_operands = 0 : i64, tpu.core_type = #tpu.core_type<tc>, window_params = [{transform_indices = @transform_0, window_bounds = array<i64: 1, 24, 64>}, {pipeline_mode = #tpu.pipeline_mode<synchronous>, transform_indices = @transform_1, window_bounds = array<i64: 24, 1>}, {pipeline_mode = #tpu.pipeline_mode<synchronous>, transform_indices = @transform_2, window_bounds = array<i64: 24, 1>}, {transform_indices = @transform_3, window_bounds = array<i64: 1, 8, 64>}, {transform_indices = @transform_4, window_bounds = array<i64: 1, 16, 64>}]} {
    %c0 = arith.constant 0 : index
    %c0_0 = arith.constant 0 : index
    %c0_1 = arith.constant 0 : index
    %0 = vector.load %arg1[%c0, %c0_0, %c0_1] : memref<1x24x64xf32, #tpu.memory_space<vmem>>, vector<1x24x64xf32>
    %1 = vector.shape_cast %0 : vector<1x24x64xf32> to vector<24x64xf32>
    %c0_2 = arith.constant 0 : index
    %c0_3 = arith.constant 0 : index
    %2 = vector.load %arg2[%c0_2, %c0_3] : memref<24x1xf32, #tpu.memory_space<vmem>>, vector<24x1xf32>
    %3 = vector.broadcast %2 : vector<24x1xf32> to vector<24x64xf32>
    %4 = arith.mulf %1, %3 : vector<24x64xf32>
    %c0_4 = arith.constant 0 : index
    %c0_5 = arith.constant 0 : index
    %5 = vector.load %arg3[%c0_4, %c0_5] : memref<24x1xf32, #tpu.memory_space<vmem>>, vector<24x1xf32>
    %6 = vector.broadcast %5 : vector<24x1xf32> to vector<24x64xf32>
    %7 = arith.addf %4, %6 : vector<24x64xf32>
    %8 = vector.extract_strided_slice %7 {offsets = [0, 0], sizes = [8, 64], strides = [1, 1]} : vector<24x64xf32> to vector<8x64xf32>
    %cst = arith.constant 0.000000e+00 : f32
    %9 = vector.broadcast %cst : f32 to vector<8x64xf32>
    %10 = arith.maximumf %8, %9 : vector<8x64xf32>
    %c0_6 = arith.constant 0 : index
    %c0_7 = arith.constant 0 : index
    %c0_8 = arith.constant 0 : index
    %11 = vector.load %arg4[%c0_6, %c0_7, %c0_8] : memref<1x8x64xf32, #tpu.memory_space<vmem>>, vector<1x8x64xf32>
    %12 = vector.shape_cast %11 : vector<1x8x64xf32> to vector<8x64xf32>
    %13 = vector.shape_cast %10 : vector<8x64xf32> to vector<1x8x64xf32>
    tpu.vector_store %arg4[%c0_6, %c0_7, %c0_8], %13 {strides = array<i32>} : memref<1x8x64xf32, #tpu.memory_space<vmem>>, vector<1x8x64xf32>,
    %14 = vector.extract_strided_slice %7 {offsets = [8, 0], sizes = [16, 64], strides = [1, 1]} : vector<24x64xf32> to vector<16x64xf32>
    %c0_9 = arith.constant 0 : index
    %c0_10 = arith.constant 0 : index
    %c0_11 = arith.constant 0 : index
    %15 = vector.load %arg5[%c0_9, %c0_10, %c0_11] : memref<1x16x64xf32, #tpu.memory_space<vmem>>, vector<1x16x64xf32>
    %16 = vector.shape_cast %15 : vector<1x16x64xf32> to vector<16x64xf32>
    %17 = vector.shape_cast %14 : vector<16x64xf32> to vector<1x16x64xf32>
    tpu.vector_store %arg5[%c0_9, %c0_10, %c0_11], %17 {strides = array<i32>} : memref<1x16x64xf32, #tpu.memory_space<vmem>>, vector<1x16x64xf32>,
    return
  }
  func.func @transform_0(%arg0: i32) -> (i32, i32, i32) {
    %c0_i32 = arith.constant 0 : i32
    %c0_i32_0 = arith.constant 0 : i32
    %c0_i32_1 = arith.constant 0 : i32
    return %arg0, %c0_i32, %c0_i32_0 : i32, i32, i32
  }
  func.func @transform_1(%arg0: i32) -> (i32, i32) {
    %c0_i32 = arith.constant 0 : i32
    %c0_i32_0 = arith.constant 0 : i32
    %c0_i32_1 = arith.constant 0 : i32
    return %c0_i32, %c0_i32_0 : i32, i32
  }
  func.func @transform_2(%arg0: i32) -> (i32, i32) {
    %c0_i32 = arith.constant 0 : i32
    %c0_i32_0 = arith.constant 0 : i32
    %c0_i32_1 = arith.constant 0 : i32
    return %c0_i32, %c0_i32_0 : i32, i32
  }
  func.func @transform_3(%arg0: i32) -> (i32, i32, i32) {
    %c0_i32 = arith.constant 0 : i32
    %c0_i32_0 = arith.constant 0 : i32
    %c0_i32_1 = arith.constant 0 : i32
    return %arg0, %c0_i32, %c0_i32_0 : i32, i32, i32
  }
  func.func @transform_4(%arg0: i32) -> (i32, i32, i32) {
    %c0_i32 = arith.constant 0 : i32
    %c0_i32_0 = arith.constant 0 : i32
    %c0_i32_1 = arith.constant 0 : i32
    return %arg0, %c0_i32, %c0_i32_0 : i32, i32, i32
  }
}

module attributes {stable_mosaic.version = 11 : i64} {
  func.func @_conv3_kernel(%arg0: i32, %arg1: i32, %arg2: memref<1x1x3x8x80xf32, #tpu.memory_space<vmem>>, %arg3: memref<1x1x3x8x80xf32, #tpu.memory_space<vmem>>, %arg4: memref<1x1x3x8x80xf32, #tpu.memory_space<vmem>>, %arg5: memref<8x216xf32, #tpu.memory_space<vmem>>, %arg6: memref<1x1x8x64xf32, #tpu.memory_space<vmem>>, %arg7: memref<1x1x8x2xf32, #tpu.memory_space<vmem>>) attributes {dimension_semantics = [#tpu.dimension_semantics<parallel>, #tpu.dimension_semantics<parallel>], iteration_bounds = array<i64: 2, 4>, scalar_prefetch = 0 : i64, scratch_operands = 0 : i64, tpu.core_type = #tpu.core_type<tc>, window_params = [{transform_indices = @transform_0, window_bounds = array<i64: 1, 1, 3, 8, 80>}, {transform_indices = @transform_1, window_bounds = array<i64: 1, 1, 3, 8, 80>}, {transform_indices = @transform_2, window_bounds = array<i64: 1, 1, 3, 8, 80>}, {pipeline_mode = #tpu.pipeline_mode<synchronous>, transform_indices = @transform_3, window_bounds = array<i64: 8, 216>}, {transform_indices = @transform_4, window_bounds = array<i64: 1, 1, 8, 64>}, {transform_indices = @transform_5, window_bounds = array<i64: 1, 1, 8, 2>}]} {
    %c0 = arith.constant 0 : index
    %c0_0 = arith.constant 0 : index
    %c0_1 = arith.constant 0 : index
    %c0_2 = arith.constant 0 : index
    %c0_3 = arith.constant 0 : index
    %0 = vector.load %arg2[%c0, %c0_0, %c0_1, %c0_2, %c0_3] : memref<1x1x3x8x80xf32, #tpu.memory_space<vmem>>, vector<1x1x1x8x64xf32>
    %1 = vector.shape_cast %0 : vector<1x1x1x8x64xf32> to vector<8x64xf32>
    %c0_4 = arith.constant 0 : index
    %c0_5 = arith.constant 0 : index
    %c1 = arith.constant 1 : index
    %c0_6 = arith.constant 0 : index
    %c0_7 = arith.constant 0 : index
    %2 = vector.load %arg2[%c0_4, %c0_5, %c1, %c0_6, %c0_7] : memref<1x1x3x8x80xf32, #tpu.memory_space<vmem>>, vector<1x1x1x8x64xf32>
    %3 = vector.shape_cast %2 : vector<1x1x1x8x64xf32> to vector<8x64xf32>
    %c0_8 = arith.constant 0 : index
    %c0_9 = arith.constant 0 : index
    %c2 = arith.constant 2 : index
    %c0_10 = arith.constant 0 : index
    %c0_11 = arith.constant 0 : index
    %4 = vector.load %arg2[%c0_8, %c0_9, %c2, %c0_10, %c0_11] : memref<1x1x3x8x80xf32, #tpu.memory_space<vmem>>, vector<1x1x1x8x64xf32>
    %5 = vector.shape_cast %4 : vector<1x1x1x8x64xf32> to vector<8x64xf32>
    %c0_12 = arith.constant 0 : index
    %c0_13 = arith.constant 0 : index
    %c0_14 = arith.constant 0 : index
    %c0_15 = arith.constant 0 : index
    %c8 = arith.constant 8 : index
    %6 = vector.load %arg2[%c0_12, %c0_13, %c0_14, %c0_15, %c8] : memref<1x1x3x8x80xf32, #tpu.memory_space<vmem>>, vector<1x1x1x8x64xf32>
    %7 = vector.shape_cast %6 : vector<1x1x1x8x64xf32> to vector<8x64xf32>
    %c0_16 = arith.constant 0 : index
    %c0_17 = arith.constant 0 : index
    %c1_18 = arith.constant 1 : index
    %c0_19 = arith.constant 0 : index
    %c8_20 = arith.constant 8 : index
    %8 = vector.load %arg2[%c0_16, %c0_17, %c1_18, %c0_19, %c8_20] : memref<1x1x3x8x80xf32, #tpu.memory_space<vmem>>, vector<1x1x1x8x64xf32>
    %9 = vector.shape_cast %8 : vector<1x1x1x8x64xf32> to vector<8x64xf32>
    %c0_21 = arith.constant 0 : index
    %c0_22 = arith.constant 0 : index
    %c2_23 = arith.constant 2 : index
    %c0_24 = arith.constant 0 : index
    %c8_25 = arith.constant 8 : index
    %10 = vector.load %arg2[%c0_21, %c0_22, %c2_23, %c0_24, %c8_25] : memref<1x1x3x8x80xf32, #tpu.memory_space<vmem>>, vector<1x1x1x8x64xf32>
    %11 = vector.shape_cast %10 : vector<1x1x1x8x64xf32> to vector<8x64xf32>
    %c0_26 = arith.constant 0 : index
    %c0_27 = arith.constant 0 : index
    %c0_28 = arith.constant 0 : index
    %c0_29 = arith.constant 0 : index
    %c16 = arith.constant 16 : index
    %12 = vector.load %arg2[%c0_26, %c0_27, %c0_28, %c0_29, %c16] : memref<1x1x3x8x80xf32, #tpu.memory_space<vmem>>, vector<1x1x1x8x64xf32>
    %13 = vector.shape_cast %12 : vector<1x1x1x8x64xf32> to vector<8x64xf32>
    %c0_30 = arith.constant 0 : index
    %c0_31 = arith.constant 0 : index
    %c1_32 = arith.constant 1 : index
    %c0_33 = arith.constant 0 : index
    %c16_34 = arith.constant 16 : index
    %14 = vector.load %arg2[%c0_30, %c0_31, %c1_32, %c0_33, %c16_34] : memref<1x1x3x8x80xf32, #tpu.memory_space<vmem>>, vector<1x1x1x8x64xf32>
    %15 = vector.shape_cast %14 : vector<1x1x1x8x64xf32> to vector<8x64xf32>
    %c0_35 = arith.constant 0 : index
    %c0_36 = arith.constant 0 : index
    %c2_37 = arith.constant 2 : index
    %c0_38 = arith.constant 0 : index
    %c16_39 = arith.constant 16 : index
    %16 = vector.load %arg2[%c0_35, %c0_36, %c2_37, %c0_38, %c16_39] : memref<1x1x3x8x80xf32, #tpu.memory_space<vmem>>, vector<1x1x1x8x64xf32>
    %17 = vector.shape_cast %16 : vector<1x1x1x8x64xf32> to vector<8x64xf32>
    %c0_40 = arith.constant 0 : index
    %c0_41 = arith.constant 0 : index
    %c0_42 = arith.constant 0 : index
    %c0_43 = arith.constant 0 : index
    %c0_44 = arith.constant 0 : index
    %18 = vector.load %arg3[%c0_40, %c0_41, %c0_42, %c0_43, %c0_44] : memref<1x1x3x8x80xf32, #tpu.memory_space<vmem>>, vector<1x1x1x8x64xf32>
    %19 = vector.shape_cast %18 : vector<1x1x1x8x64xf32> to vector<8x64xf32>
    %c0_45 = arith.constant 0 : index
    %c0_46 = arith.constant 0 : index
    %c1_47 = arith.constant 1 : index
    %c0_48 = arith.constant 0 : index
    %c0_49 = arith.constant 0 : index
    %20 = vector.load %arg3[%c0_45, %c0_46, %c1_47, %c0_48, %c0_49] : memref<1x1x3x8x80xf32, #tpu.memory_space<vmem>>, vector<1x1x1x8x64xf32>
    %21 = vector.shape_cast %20 : vector<1x1x1x8x64xf32> to vector<8x64xf32>
    %c0_50 = arith.constant 0 : index
    %c0_51 = arith.constant 0 : index
    %c2_52 = arith.constant 2 : index
    %c0_53 = arith.constant 0 : index
    %c0_54 = arith.constant 0 : index
    %22 = vector.load %arg3[%c0_50, %c0_51, %c2_52, %c0_53, %c0_54] : memref<1x1x3x8x80xf32, #tpu.memory_space<vmem>>, vector<1x1x1x8x64xf32>
    %23 = vector.shape_cast %22 : vector<1x1x1x8x64xf32> to vector<8x64xf32>
    %c0_55 = arith.constant 0 : index
    %c0_56 = arith.constant 0 : index
    %c0_57 = arith.constant 0 : index
    %c0_58 = arith.constant 0 : index
    %c8_59 = arith.constant 8 : index
    %24 = vector.load %arg3[%c0_55, %c0_56, %c0_57, %c0_58, %c8_59] : memref<1x1x3x8x80xf32, #tpu.memory_space<vmem>>, vector<1x1x1x8x64xf32>
    %25 = vector.shape_cast %24 : vector<1x1x1x8x64xf32> to vector<8x64xf32>
    %c0_60 = arith.constant 0 : index
    %c0_61 = arith.constant 0 : index
    %c1_62 = arith.constant 1 : index
    %c0_63 = arith.constant 0 : index
    %c8_64 = arith.constant 8 : index
    %26 = vector.load %arg3[%c0_60, %c0_61, %c1_62, %c0_63, %c8_64] : memref<1x1x3x8x80xf32, #tpu.memory_space<vmem>>, vector<1x1x1x8x64xf32>
    %27 = vector.shape_cast %26 : vector<1x1x1x8x64xf32> to vector<8x64xf32>
    %c0_65 = arith.constant 0 : index
    %c0_66 = arith.constant 0 : index
    %c2_67 = arith.constant 2 : index
    %c0_68 = arith.constant 0 : index
    %c8_69 = arith.constant 8 : index
    %28 = vector.load %arg3[%c0_65, %c0_66, %c2_67, %c0_68, %c8_69] : memref<1x1x3x8x80xf32, #tpu.memory_space<vmem>>, vector<1x1x1x8x64xf32>
    %29 = vector.shape_cast %28 : vector<1x1x1x8x64xf32> to vector<8x64xf32>
    %c0_70 = arith.constant 0 : index
    %c0_71 = arith.constant 0 : index
    %c0_72 = arith.constant 0 : index
    %c0_73 = arith.constant 0 : index
    %c16_74 = arith.constant 16 : index
    %30 = vector.load %arg3[%c0_70, %c0_71, %c0_72, %c0_73, %c16_74] : memref<1x1x3x8x80xf32, #tpu.memory_space<vmem>>, vector<1x1x1x8x64xf32>
    %31 = vector.shape_cast %30 : vector<1x1x1x8x64xf32> to vector<8x64xf32>
    %c0_75 = arith.constant 0 : index
    %c0_76 = arith.constant 0 : index
    %c1_77 = arith.constant 1 : index
    %c0_78 = arith.constant 0 : index
    %c16_79 = arith.constant 16 : index
    %32 = vector.load %arg3[%c0_75, %c0_76, %c1_77, %c0_78, %c16_79] : memref<1x1x3x8x80xf32, #tpu.memory_space<vmem>>, vector<1x1x1x8x64xf32>
    %33 = vector.shape_cast %32 : vector<1x1x1x8x64xf32> to vector<8x64xf32>
    %c0_80 = arith.constant 0 : index
    %c0_81 = arith.constant 0 : index
    %c2_82 = arith.constant 2 : index
    %c0_83 = arith.constant 0 : index
    %c16_84 = arith.constant 16 : index
    %34 = vector.load %arg3[%c0_80, %c0_81, %c2_82, %c0_83, %c16_84] : memref<1x1x3x8x80xf32, #tpu.memory_space<vmem>>, vector<1x1x1x8x64xf32>
    %35 = vector.shape_cast %34 : vector<1x1x1x8x64xf32> to vector<8x64xf32>
    %c0_85 = arith.constant 0 : index
    %c0_86 = arith.constant 0 : index
    %c0_87 = arith.constant 0 : index
    %c0_88 = arith.constant 0 : index
    %c0_89 = arith.constant 0 : index
    %36 = vector.load %arg4[%c0_85, %c0_86, %c0_87, %c0_88, %c0_89] : memref<1x1x3x8x80xf32, #tpu.memory_space<vmem>>, vector<1x1x1x8x64xf32>
    %37 = vector.shape_cast %36 : vector<1x1x1x8x64xf32> to vector<8x64xf32>
    %c0_90 = arith.constant 0 : index
    %c0_91 = arith.constant 0 : index
    %c1_92 = arith.constant 1 : index
    %c0_93 = arith.constant 0 : index
    %c0_94 = arith.constant 0 : index
    %38 = vector.load %arg4[%c0_90, %c0_91, %c1_92, %c0_93, %c0_94] : memref<1x1x3x8x80xf32, #tpu.memory_space<vmem>>, vector<1x1x1x8x64xf32>
    %39 = vector.shape_cast %38 : vector<1x1x1x8x64xf32> to vector<8x64xf32>
    %c0_95 = arith.constant 0 : index
    %c0_96 = arith.constant 0 : index
    %c2_97 = arith.constant 2 : index
    %c0_98 = arith.constant 0 : index
    %c0_99 = arith.constant 0 : index
    %40 = vector.load %arg4[%c0_95, %c0_96, %c2_97, %c0_98, %c0_99] : memref<1x1x3x8x80xf32, #tpu.memory_space<vmem>>, vector<1x1x1x8x64xf32>
    %41 = vector.shape_cast %40 : vector<1x1x1x8x64xf32> to vector<8x64xf32>
    %c0_100 = arith.constant 0 : index
    %c0_101 = arith.constant 0 : index
    %c0_102 = arith.constant 0 : index
    %c0_103 = arith.constant 0 : index
    %c8_104 = arith.constant 8 : index
    %42 = vector.load %arg4[%c0_100, %c0_101, %c0_102, %c0_103, %c8_104] : memref<1x1x3x8x80xf32, #tpu.memory_space<vmem>>, vector<1x1x1x8x64xf32>
    %43 = vector.shape_cast %42 : vector<1x1x1x8x64xf32> to vector<8x64xf32>
    %c0_105 = arith.constant 0 : index
    %c0_106 = arith.constant 0 : index
    %c1_107 = arith.constant 1 : index
    %c0_108 = arith.constant 0 : index
    %c8_109 = arith.constant 8 : index
    %44 = vector.load %arg4[%c0_105, %c0_106, %c1_107, %c0_108, %c8_109] : memref<1x1x3x8x80xf32, #tpu.memory_space<vmem>>, vector<1x1x1x8x64xf32>
    %45 = vector.shape_cast %44 : vector<1x1x1x8x64xf32> to vector<8x64xf32>
    %c0_110 = arith.constant 0 : index
    %c0_111 = arith.constant 0 : index
    %c2_112 = arith.constant 2 : index
    %c0_113 = arith.constant 0 : index
    %c8_114 = arith.constant 8 : index
    %46 = vector.load %arg4[%c0_110, %c0_111, %c2_112, %c0_113, %c8_114] : memref<1x1x3x8x80xf32, #tpu.memory_space<vmem>>, vector<1x1x1x8x64xf32>
    %47 = vector.shape_cast %46 : vector<1x1x1x8x64xf32> to vector<8x64xf32>
    %c0_115 = arith.constant 0 : index
    %c0_116 = arith.constant 0 : index
    %c0_117 = arith.constant 0 : index
    %c0_118 = arith.constant 0 : index
    %c16_119 = arith.constant 16 : index
    %48 = vector.load %arg4[%c0_115, %c0_116, %c0_117, %c0_118, %c16_119] : memref<1x1x3x8x80xf32, #tpu.memory_space<vmem>>, vector<1x1x1x8x64xf32>
    %49 = vector.shape_cast %48 : vector<1x1x1x8x64xf32> to vector<8x64xf32>
    %c0_120 = arith.constant 0 : index
    %c0_121 = arith.constant 0 : index
    %c1_122 = arith.constant 1 : index
    %c0_123 = arith.constant 0 : index
    %c16_124 = arith.constant 16 : index
    %50 = vector.load %arg4[%c0_120, %c0_121, %c1_122, %c0_123, %c16_124] : memref<1x1x3x8x80xf32, #tpu.memory_space<vmem>>, vector<1x1x1x8x64xf32>
    %51 = vector.shape_cast %50 : vector<1x1x1x8x64xf32> to vector<8x64xf32>
    %c0_125 = arith.constant 0 : index
    %c0_126 = arith.constant 0 : index
    %c2_127 = arith.constant 2 : index
    %c0_128 = arith.constant 0 : index
    %c16_129 = arith.constant 16 : index
    %52 = vector.load %arg4[%c0_125, %c0_126, %c2_127, %c0_128, %c16_129] : memref<1x1x3x8x80xf32, #tpu.memory_space<vmem>>, vector<1x1x1x8x64xf32>
    %53 = vector.shape_cast %52 : vector<1x1x1x8x64xf32> to vector<8x64xf32>
    %54 = tpu.concatenate %1, %3, %5, %7, %9, %11, %13, %15, %17, %19, %21, %23, %25, %27, %29, %31 in 0 : vector<8x64xf32>, vector<8x64xf32>, vector<8x64xf32>, vector<8x64xf32>, vector<8x64xf32>, vector<8x64xf32>, vector<8x64xf32>, vector<8x64xf32>, vector<8x64xf32>, vector<8x64xf32>, vector<8x64xf32>, vector<8x64xf32>, vector<8x64xf32>, vector<8x64xf32>, vector<8x64xf32>, vector<8x64xf32> -> vector<128x64xf32>
    %55 = tpu.concatenate %33, %35, %37, %39, %41, %43, %45, %47, %49, %51, %53 in 0 : vector<8x64xf32>, vector<8x64xf32>, vector<8x64xf32>, vector<8x64xf32>, vector<8x64xf32>, vector<8x64xf32>, vector<8x64xf32>, vector<8x64xf32>, vector<8x64xf32>, vector<8x64xf32>, vector<8x64xf32> -> vector<88x64xf32>
    %56 = tpu.concatenate %54, %55 in 0 : vector<128x64xf32>, vector<88x64xf32> -> vector<216x64xf32>
    %c0_130 = arith.constant 0 : index
    %c0_131 = arith.constant 0 : index
    %57 = vector.load %arg5[%c0_130, %c0_131] : memref<8x216xf32, #tpu.memory_space<vmem>>, vector<8x216xf32>
    %cst = arith.constant dense<0.000000e+00> : vector<8x64xf32>
    %58 = tpu.matmul %57, %56, %cst {dimension_numbers = #tpu.dot_dimension_numbers<[1], [0], [0], [1], [0, 0, 1, 1], [], []>} : vector<8x216xf32>, vector<216x64xf32>, vector<8x64xf32> -> vector<8x64xf32>
    %c0_132 = arith.constant 0 : index
    %c0_133 = arith.constant 0 : index
    %c0_134 = arith.constant 0 : index
    %c0_135 = arith.constant 0 : index
    %59 = vector.load %arg6[%c0_132, %c0_133, %c0_134, %c0_135] : memref<1x1x8x64xf32, #tpu.memory_space<vmem>>, vector<1x1x8x64xf32>
    %60 = vector.shape_cast %59 : vector<1x1x8x64xf32> to vector<8x64xf32>
    %61 = vector.shape_cast %58 : vector<8x64xf32> to vector<1x1x8x64xf32>
    tpu.vector_store %arg6[%c0_132, %c0_133, %c0_134, %c0_135], %61 {strides = array<i32>} : memref<1x1x8x64xf32, #tpu.memory_space<vmem>>, vector<1x1x8x64xf32>,
    %cst_136 = arith.constant dense<0.000000e+00> : vector<8xf32>
    %62 = vector.multi_reduction <add>, %58, %cst_136 [1] : vector<8x64xf32> to vector<8xf32>
    %63 = vector.shape_cast %62 : vector<8xf32> to vector<8x1xf32>
    %64 = arith.mulf %58, %58 : vector<8x64xf32>
    %cst_137 = arith.constant dense<0.000000e+00> : vector<8xf32>
    %65 = vector.multi_reduction <add>, %64, %cst_137 [1] : vector<8x64xf32> to vector<8xf32>
    %66 = vector.shape_cast %65 : vector<8xf32> to vector<8x1xf32>
    %67 = tpu.concatenate %63, %66 in 1 : vector<8x1xf32>, vector<8x1xf32> -> vector<8x2xf32>
    %c0_138 = arith.constant 0 : index
    %c0_139 = arith.constant 0 : index
    %c0_140 = arith.constant 0 : index
    %c0_141 = arith.constant 0 : index
    %68 = vector.load %arg7[%c0_138, %c0_139, %c0_140, %c0_141] : memref<1x1x8x2xf32, #tpu.memory_space<vmem>>, vector<1x1x8x2xf32>
    %69 = vector.shape_cast %68 : vector<1x1x8x2xf32> to vector<8x2xf32>
    %70 = vector.shape_cast %67 : vector<8x2xf32> to vector<1x1x8x2xf32>
    tpu.vector_store %arg7[%c0_138, %c0_139, %c0_140, %c0_141], %70 {strides = array<i32>} : memref<1x1x8x2xf32, #tpu.memory_space<vmem>>, vector<1x1x8x2xf32>,
    return
  }
  func.func @transform_0(%arg0: i32, %arg1: i32) -> (i32, i32, i32, i32, i32) {
    %c0_i32 = arith.constant 0 : i32
    %0 = arith.addi %arg1, %c0_i32 : i32
    %c0_i32_0 = arith.constant 0 : i32
    %c0_i32_1 = arith.constant 0 : i32
    %c0_i32_2 = arith.constant 0 : i32
    %c0_i32_3 = arith.constant 0 : i32
    return %arg0, %0, %c0_i32_0, %c0_i32_1, %c0_i32_2 : i32, i32, i32, i32, i32
  }
  func.func @transform_1(%arg0: i32, %arg1: i32) -> (i32, i32, i32, i32, i32) {
    %c1_i32 = arith.constant 1 : i32
    %0 = arith.addi %arg1, %c1_i32 : i32
    %c0_i32 = arith.constant 0 : i32
    %c0_i32_0 = arith.constant 0 : i32
    %c0_i32_1 = arith.constant 0 : i32
    %c0_i32_2 = arith.constant 0 : i32
    return %arg0, %0, %c0_i32, %c0_i32_0, %c0_i32_1 : i32, i32, i32, i32, i32
  }
  func.func @transform_2(%arg0: i32, %arg1: i32) -> (i32, i32, i32, i32, i32) {
    %c2_i32 = arith.constant 2 : i32
    %0 = arith.addi %arg1, %c2_i32 : i32
    %c0_i32 = arith.constant 0 : i32
    %c0_i32_0 = arith.constant 0 : i32
    %c0_i32_1 = arith.constant 0 : i32
    %c0_i32_2 = arith.constant 0 : i32
    return %arg0, %0, %c0_i32, %c0_i32_0, %c0_i32_1 : i32, i32, i32, i32, i32
  }
  func.func @transform_3(%arg0: i32, %arg1: i32) -> (i32, i32) {
    %c0_i32 = arith.constant 0 : i32
    %c0_i32_0 = arith.constant 0 : i32
    %c0_i32_1 = arith.constant 0 : i32
    return %c0_i32, %c0_i32_0 : i32, i32
  }
  func.func @transform_4(%arg0: i32, %arg1: i32) -> (i32, i32, i32, i32) {
    %c0_i32 = arith.constant 0 : i32
    %c0_i32_0 = arith.constant 0 : i32
    %c0_i32_1 = arith.constant 0 : i32
    return %arg0, %arg1, %c0_i32, %c0_i32_0 : i32, i32, i32, i32
  }
  func.func @transform_5(%arg0: i32, %arg1: i32) -> (i32, i32, i32, i32) {
    %c0_i32 = arith.constant 0 : i32
    %c0_i32_0 = arith.constant 0 : i32
    %c0_i32_1 = arith.constant 0 : i32
    return %arg0, %arg1, %c0_i32, %c0_i32_0 : i32, i32, i32, i32
  }
}

module attributes {stable_mosaic.version = 11 : i64} {
  func.func @_pconv_kernel(%arg0: i32, %arg1: memref<1x8x64xf32, #tpu.memory_space<vmem>>, %arg2: memref<16x8xf32, #tpu.memory_space<vmem>>, %arg3: memref<8x1xf32, #tpu.memory_space<vmem>>, %arg4: memref<8x1xf32, #tpu.memory_space<vmem>>, %arg5: memref<1x16x64xf32, #tpu.memory_space<vmem>>, %arg6: memref<1x16x2xf32, #tpu.memory_space<vmem>>) attributes {dimension_semantics = [#tpu.dimension_semantics<parallel>], iteration_bounds = array<i64: 8>, scalar_prefetch = 0 : i64, scratch_operands = 0 : i64, tpu.core_type = #tpu.core_type<tc>, window_params = [{transform_indices = @transform_0, window_bounds = array<i64: 1, 8, 64>}, {pipeline_mode = #tpu.pipeline_mode<synchronous>, transform_indices = @transform_1, window_bounds = array<i64: 16, 8>}, {pipeline_mode = #tpu.pipeline_mode<synchronous>, transform_indices = @transform_2, window_bounds = array<i64: 8, 1>}, {pipeline_mode = #tpu.pipeline_mode<synchronous>, transform_indices = @transform_3, window_bounds = array<i64: 8, 1>}, {transform_indices = @transform_4, window_bounds = array<i64: 1, 16, 64>}, {transform_indices = @transform_5, window_bounds = array<i64: 1, 16, 2>}]} {
    %c0 = arith.constant 0 : index
    %c0_0 = arith.constant 0 : index
    %c0_1 = arith.constant 0 : index
    %0 = vector.load %arg1[%c0, %c0_0, %c0_1] : memref<1x8x64xf32, #tpu.memory_space<vmem>>, vector<1x8x64xf32>
    %1 = vector.shape_cast %0 : vector<1x8x64xf32> to vector<8x64xf32>
    %c0_2 = arith.constant 0 : index
    %c0_3 = arith.constant 0 : index
    %2 = vector.load %arg3[%c0_2, %c0_3] : memref<8x1xf32, #tpu.memory_space<vmem>>, vector<8x1xf32>
    %3 = vector.broadcast %2 : vector<8x1xf32> to vector<8x64xf32>
    %4 = arith.mulf %1, %3 : vector<8x64xf32>
    %c0_4 = arith.constant 0 : index
    %c0_5 = arith.constant 0 : index
    %5 = vector.load %arg4[%c0_4, %c0_5] : memref<8x1xf32, #tpu.memory_space<vmem>>, vector<8x1xf32>
    %6 = vector.broadcast %5 : vector<8x1xf32> to vector<8x64xf32>
    %7 = arith.addf %4, %6 : vector<8x64xf32>
    %cst = arith.constant 0.000000e+00 : f32
    %8 = vector.broadcast %cst : f32 to vector<8x64xf32>
    %9 = arith.maximumf %7, %8 : vector<8x64xf32>
    %c0_6 = arith.constant 0 : index
    %c0_7 = arith.constant 0 : index
    %10 = vector.load %arg2[%c0_6, %c0_7] : memref<16x8xf32, #tpu.memory_space<vmem>>, vector<16x8xf32>
    %cst_8 = arith.constant dense<0.000000e+00> : vector<16x64xf32>
    %11 = tpu.matmul %10, %9, %cst_8 {dimension_numbers = #tpu.dot_dimension_numbers<[1], [0], [0], [1], [0, 0, 1, 1], [], []>} : vector<16x8xf32>, vector<8x64xf32>, vector<16x64xf32> -> vector<16x64xf32>
    %c0_9 = arith.constant 0 : index
    %c0_10 = arith.constant 0 : index
    %c0_11 = arith.constant 0 : index
    %12 = vector.load %arg5[%c0_9, %c0_10, %c0_11] : memref<1x16x64xf32, #tpu.memory_space<vmem>>, vector<1x16x64xf32>
    %13 = vector.shape_cast %12 : vector<1x16x64xf32> to vector<16x64xf32>
    %14 = vector.shape_cast %11 : vector<16x64xf32> to vector<1x16x64xf32>
    tpu.vector_store %arg5[%c0_9, %c0_10, %c0_11], %14 {strides = array<i32>} : memref<1x16x64xf32, #tpu.memory_space<vmem>>, vector<1x16x64xf32>,
    %cst_12 = arith.constant dense<0.000000e+00> : vector<16xf32>
    %15 = vector.multi_reduction <add>, %11, %cst_12 [1] : vector<16x64xf32> to vector<16xf32>
    %16 = vector.shape_cast %15 : vector<16xf32> to vector<16x1xf32>
    %17 = arith.mulf %11, %11 : vector<16x64xf32>
    %cst_13 = arith.constant dense<0.000000e+00> : vector<16xf32>
    %18 = vector.multi_reduction <add>, %17, %cst_13 [1] : vector<16x64xf32> to vector<16xf32>
    %19 = vector.shape_cast %18 : vector<16xf32> to vector<16x1xf32>
    %20 = tpu.concatenate %16, %19 in 1 : vector<16x1xf32>, vector<16x1xf32> -> vector<16x2xf32>
    %c0_14 = arith.constant 0 : index
    %c0_15 = arith.constant 0 : index
    %c0_16 = arith.constant 0 : index
    %21 = vector.load %arg6[%c0_14, %c0_15, %c0_16] : memref<1x16x2xf32, #tpu.memory_space<vmem>>, vector<1x16x2xf32>
    %22 = vector.shape_cast %21 : vector<1x16x2xf32> to vector<16x2xf32>
    %23 = vector.shape_cast %20 : vector<16x2xf32> to vector<1x16x2xf32>
    tpu.vector_store %arg6[%c0_14, %c0_15, %c0_16], %23 {strides = array<i32>} : memref<1x16x2xf32, #tpu.memory_space<vmem>>, vector<1x16x2xf32>,
    return
  }
  func.func @transform_0(%arg0: i32) -> (i32, i32, i32) {
    %c0_i32 = arith.constant 0 : i32
    %c0_i32_0 = arith.constant 0 : i32
    %c0_i32_1 = arith.constant 0 : i32
    return %arg0, %c0_i32, %c0_i32_0 : i32, i32, i32
  }
  func.func @transform_1(%arg0: i32) -> (i32, i32) {
    %c0_i32 = arith.constant 0 : i32
    %c0_i32_0 = arith.constant 0 : i32
    %c0_i32_1 = arith.constant 0 : i32
    return %c0_i32, %c0_i32_0 : i32, i32
  }
  func.func @transform_2(%arg0: i32) -> (i32, i32) {
    %c0_i32 = arith.constant 0 : i32
    %c0_i32_0 = arith.constant 0 : i32
    %c0_i32_1 = arith.constant 0 : i32
    return %c0_i32, %c0_i32_0 : i32, i32
  }
  func.func @transform_3(%arg0: i32) -> (i32, i32) {
    %c0_i32 = arith.constant 0 : i32
    %c0_i32_0 = arith.constant 0 : i32
    %c0_i32_1 = arith.constant 0 : i32
    return %c0_i32, %c0_i32_0 : i32, i32
  }
  func.func @transform_4(%arg0: i32) -> (i32, i32, i32) {
    %c0_i32 = arith.constant 0 : i32
    %c0_i32_0 = arith.constant 0 : i32
    %c0_i32_1 = arith.constant 0 : i32
    return %arg0, %c0_i32, %c0_i32_0 : i32, i32, i32
  }
  func.func @transform_5(%arg0: i32) -> (i32, i32, i32) {
    %c0_i32 = arith.constant 0 : i32
    %c0_i32_0 = arith.constant 0 : i32
    %c0_i32_1 = arith.constant 0 : i32
    return %arg0, %c0_i32, %c0_i32_0 : i32, i32, i32
  }
}

module attributes {stable_mosaic.version = 11 : i64} {
  func.func @_norm_residual_kernel(%arg0: i32, %arg1: memref<1x16x64xf32, #tpu.memory_space<vmem>>, %arg2: memref<16x1xf32, #tpu.memory_space<vmem>>, %arg3: memref<16x1xf32, #tpu.memory_space<vmem>>, %arg4: memref<1x16x64xf32, #tpu.memory_space<vmem>>, %arg5: memref<1x16x64xf32, #tpu.memory_space<vmem>>) attributes {dimension_semantics = [#tpu.dimension_semantics<parallel>], iteration_bounds = array<i64: 8>, scalar_prefetch = 0 : i64, scratch_operands = 0 : i64, tpu.core_type = #tpu.core_type<tc>, window_params = [{transform_indices = @transform_0, window_bounds = array<i64: 1, 16, 64>}, {pipeline_mode = #tpu.pipeline_mode<synchronous>, transform_indices = @transform_1, window_bounds = array<i64: 16, 1>}, {pipeline_mode = #tpu.pipeline_mode<synchronous>, transform_indices = @transform_2, window_bounds = array<i64: 16, 1>}, {transform_indices = @transform_3, window_bounds = array<i64: 1, 16, 64>}, {transform_indices = @transform_4, window_bounds = array<i64: 1, 16, 64>}]} {
    %c0 = arith.constant 0 : index
    %c0_0 = arith.constant 0 : index
    %c0_1 = arith.constant 0 : index
    %0 = vector.load %arg1[%c0, %c0_0, %c0_1] : memref<1x16x64xf32, #tpu.memory_space<vmem>>, vector<1x16x64xf32>
    %1 = vector.shape_cast %0 : vector<1x16x64xf32> to vector<16x64xf32>
    %c0_2 = arith.constant 0 : index
    %c0_3 = arith.constant 0 : index
    %2 = vector.load %arg2[%c0_2, %c0_3] : memref<16x1xf32, #tpu.memory_space<vmem>>, vector<16x1xf32>
    %3 = vector.broadcast %2 : vector<16x1xf32> to vector<16x64xf32>
    %4 = arith.mulf %1, %3 : vector<16x64xf32>
    %c0_4 = arith.constant 0 : index
    %c0_5 = arith.constant 0 : index
    %5 = vector.load %arg3[%c0_4, %c0_5] : memref<16x1xf32, #tpu.memory_space<vmem>>, vector<16x1xf32>
    %6 = vector.broadcast %5 : vector<16x1xf32> to vector<16x64xf32>
    %7 = arith.addf %4, %6 : vector<16x64xf32>
    %c0_6 = arith.constant 0 : index
    %c0_7 = arith.constant 0 : index
    %c0_8 = arith.constant 0 : index
    %8 = vector.load %arg4[%c0_6, %c0_7, %c0_8] : memref<1x16x64xf32, #tpu.memory_space<vmem>>, vector<1x16x64xf32>
    %9 = vector.shape_cast %8 : vector<1x16x64xf32> to vector<16x64xf32>
    %10 = arith.addf %7, %9 : vector<16x64xf32>
    %c0_9 = arith.constant 0 : index
    %c0_10 = arith.constant 0 : index
    %c0_11 = arith.constant 0 : index
    %11 = vector.load %arg5[%c0_9, %c0_10, %c0_11] : memref<1x16x64xf32, #tpu.memory_space<vmem>>, vector<1x16x64xf32>
    %12 = vector.shape_cast %11 : vector<1x16x64xf32> to vector<16x64xf32>
    %13 = vector.shape_cast %10 : vector<16x64xf32> to vector<1x16x64xf32>
    tpu.vector_store %arg5[%c0_9, %c0_10, %c0_11], %13 {strides = array<i32>} : memref<1x16x64xf32, #tpu.memory_space<vmem>>, vector<1x16x64xf32>,
    return
  }
  func.func @transform_0(%arg0: i32) -> (i32, i32, i32) {
    %c0_i32 = arith.constant 0 : i32
    %c0_i32_0 = arith.constant 0 : i32
    %c0_i32_1 = arith.constant 0 : i32
    return %arg0, %c0_i32, %c0_i32_0 : i32, i32, i32
  }
  func.func @transform_1(%arg0: i32) -> (i32, i32) {
    %c0_i32 = arith.constant 0 : i32
    %c0_i32_0 = arith.constant 0 : i32
    %c0_i32_1 = arith.constant 0 : i32
    return %c0_i32, %c0_i32_0 : i32, i32
  }
  func.func @transform_2(%arg0: i32) -> (i32, i32) {
    %c0_i32 = arith.constant 0 : i32
    %c0_i32_0 = arith.constant 0 : i32
    %c0_i32_1 = arith.constant 0 : i32
    return %c0_i32, %c0_i32_0 : i32, i32
  }
  func.func @transform_3(%arg0: i32) -> (i32, i32, i32) {
    %c0_i32 = arith.constant 0 : i32
    %c0_i32_0 = arith.constant 0 : i32
    %c0_i32_1 = arith.constant 0 : i32
    return %arg0, %c0_i32, %c0_i32_0 : i32, i32, i32
  }
  func.func @transform_4(%arg0: i32) -> (i32, i32, i32) {
    %c0_i32 = arith.constant 0 : i32
    %c0_i32_0 = arith.constant 0 : i32
    %c0_i32_1 = arith.constant 0 : i32
    return %arg0, %c0_i32, %c0_i32_0 : i32, i32, i32
  }
}

</mosaic_0001>

<llo_original>
// kernel: residual_identity_block.6
$region0: #{residual_identity_block.6}
  #allocation0 [shape = 'u32[]', space=smem, size = 0x4, offset = 0x4, fixed_abs, tag = 'smem constant byte address 0x4 - core index']
  #allocation1 [shape = 'u32[144,128]{1,0:T(1,128)}', space=vmem, size = 0x12000, scoped, tag = 'internal scratch']
  %s0 = inlined_call_operand.vmem [shape: f32[8,24,64], index: 0, kind: input, shape index: {}]
  %s1 = inlined_call_operand.vmem [shape: f32[24,1], index: 1, kind: input, shape index: {}]
  %s2 = inlined_call_operand.vmem [shape: f32[24,1], index: 2, kind: input, shape index: {}]
  %s3 = inlined_call_operand.vmem [shape: f32[8,8,64], index: 3, kind: output, shape index: {0}]
  %s4 = inlined_call_operand.vmem [shape: f32[8,16,64], index: 4, kind: output, shape index: {1}]
  %5 = xla_tuple %s3, %s4
  %s6 = sld [smem:[#allocation0]]
  $region53: #{residual_identity_block.6} parent=0
    _
  %s8 = ssub.s32 1, %s6
  %s9 = scalar_select 0, %s8, %s6
  loop: start=0, step=1, limit=10
  $region2: #{residual_identity_block.6} parent=0 // loop_pre_header
    _
  $region3: #{residual_identity_block.6} parent=0 // loop_header
    %s11 = sphi 0, %s15
    %p12 = scmp.ge.s32.totalorder %s11, 10
    %s21 = sphi 0, %s23
    %s24 = sphi 0, %s21
    %s25 = sphi 0, %s24
    %s41 = sphi 0, %s25
    %s45 = sphi 0, %s45
    %s47 = sphi 0, %s45
    %s48 = sphi 0, %s47
    %s62 = sphi 0, %s48
    %s66 = sphi 0, %s66
    %s68 = sphi 0, %s66
    %s69 = sphi 0, %s68
    %s83 = sphi 0, %s69
    %s89 = sphi 0, %s91
    %s92 = sphi 0, %s89
    %s93 = sphi 0, %s92
    %s109 = sphi 0, %s93
    %s115 = sphi 0, %s117
    %s118 = sphi 0, %s115
    %s119 = sphi 0, %s118
    %s135 = sphi 0, %s119
  $region4: #{residual_identity_block.6} parent=0 // loop_header_branch
    %14 = sbr.rel (%p12) target = $region8
  $region5: #{residual_identity_block.6} parent=0 // loop_body
    %s16 = ssub.s32 %s11, 1
    %s17 = ssub.s32 %s11, 2
    %s18 = sadd.s32 %s11, 1
    %s19 = ssub.s32 %s11, %s18
    %p20 = scmp.eq.s32.totalorder %s19, 0
    %s22 = sadd.s32 %s21, 1
    %s23 = scalar_select %p20, %s21, %s22
    %p26 = pneg %p20
    %p27 = scmp.eq.s32.totalorder %s11, 7
    %p28 = por %p26, %p27
    %p29 = scmp.ne.s32.totalorder %s21, %s24
    %p30 = scmp.eq.s32.totalorder %s11, 0
    %p31 = por %p29, %p30
    %p32 = scmp.ne.s32.totalorder %s21, %s24
    %p33 = scmp.eq.s32.totalorder %s16, 7
    %p34 = por %p32, %p33
    %p35 = scmp.ne.s32.totalorder %s24, %s25
    %p36 = scmp.eq.s32.totalorder %s16, 0
    %p37 = por %p35, %p36
    %p38 = scmp.ne.s32.totalorder %s24, %s25
    %p39 = scmp.eq.s32.totalorder %s17, 7
    %p40 = por %p38, %p39
    %p42 = scmp.ne.s32.totalorder %s25, %s41
    %p43 = scmp.eq.s32.totalorder %s17, 0
    %p44 = por %p42, %p43
    %s46 = sadd.s32 %s45, 1
    %p49 = scmp.eq.s32.totalorder %s11, 7
    %p50 = scmp.ne.s32.totalorder %s45, %s47
    %p51 = scmp.eq.s32.totalorder %s11, 0
    %p52 = por %p50, %p51
    %p53 = scmp.ne.s32.totalorder %s45, %s47
    %p54 = scmp.eq.s32.totalorder %s16, 7
    %p55 = por %p53, %p54
    %p56 = scmp.ne.s32.totalorder %s47, %s48
    %p57 = scmp.eq.s32.totalorder %s16, 0
    %p58 = por %p56, %p57
    %p59 = scmp.ne.s32.totalorder %s47, %s48
    %p60 = scmp.eq.s32.totalorder %s17, 7
    %p61 = por %p59, %p60
    %p63 = scmp.ne.s32.totalorder %s48, %s62
    %p64 = scmp.eq.s32.totalorder %s17, 0
    %p65 = por %p63, %p64
    %s67 = sadd.s32 %s66, 1
    %p70 = scmp.eq.s32.totalorder %s11, 7
    %p71 = scmp.ne.s32.totalorder %s66, %s68
    %p72 = scmp.eq.s32.totalorder %s11, 0
    %p73 = por %p71, %p72
    %p74 = scmp.ne.s32.totalorder %s66, %s68
    %p75 = scmp.eq.s32.totalorder %s16, 7
    %p76 = por %p74, %p75
    %p77 = scmp.ne.s32.totalorder %s68, %s69
    %p78 = scmp.eq.s32.totalorder %s16, 0
    %p79 = por %p77, %p78
    %p80 = scmp.ne.s32.totalorder %s68, %s69
    %p81 = scmp.eq.s32.totalorder %s17, 7
    %p82 = por %p80, %p81
    %p84 = scmp.ne.s32.totalorder %s69, %s83
    %p85 = scmp.eq.s32.totalorder %s17, 0
    %p86 = por %p84, %p85
    %s87 = ssub.s32 %s11, %s18
    %p88 = scmp.eq.s32.totalorder %s87, 0
    %s90 = sadd.s32 %s89, 1
    %s91 = scalar_select %p88, %s89, %s90
    %p94 = pneg %p88
    %p95 = scmp.eq.s32.totalorder %s11, 7
    %p96 = por %p94, %p95
    %p97 = scmp.ne.s32.totalorder %s89, %s92
    %p98 = scmp.eq.s32.totalorder %s11, 0
    %p99 = por %p97, %p98
    %p100 = scmp.ne.s32.totalorder %s89, %s92
    %p101 = scmp.eq.s32.totalorder %s16, 7
    %p102 = por %p100, %p101
    %p103 = scmp.ne.s32.totalorder %s92, %s93
    %p104 = scmp.eq.s32.totalorder %s16, 0
    %p105 = por %p103, %p104
    %p106 = scmp.ne.s32.totalorder %s92, %s93
    %p107 = scmp.eq.s32.totalorder %s17, 7
    %p108 = por %p106, %p107
    %p110 = scmp.ne.s32.totalorder %s93, %s109
    %p111 = scmp.eq.s32.totalorder %s17, 0
    %p112 = por %p110, %p111
    %s113 = ssub.s32 %s11, %s18
    %p114 = scmp.eq.s32.totalorder %s113, 0
    %s116 = sadd.s32 %s115, 1
    %s117 = scalar_select %p114, %s115, %s116
    %p120 = pneg %p114
    %p121 = scmp.eq.s32.totalorder %s11, 7
    %p122 = por %p120, %p121
    %p123 = scmp.ne.s32.totalorder %s115, %s118
    %p124 = scmp.eq.s32.totalorder %s11, 0
    %p125 = por %p123, %p124
    %p126 = scmp.ne.s32.totalorder %s115, %s118
    %p127 = scmp.eq.s32.totalorder %s16, 7
    %p128 = por %p126, %p127
    %p129 = scmp.ne.s32.totalorder %s118, %s119
    %p130 = scmp.eq.s32.totalorder %s16, 0
    %p131 = por %p129, %p130
    %p132 = scmp.ne.s32.totalorder %s118, %s119
    %p133 = scmp.eq.s32.totalorder %s17, 7
    %p134 = por %p132, %p133
    %p136 = scmp.ne.s32.totalorder %s119, %s135
    %p137 = scmp.eq.s32.totalorder %s17, 0
    %p138 = por %p136, %p137
    %p139 = scmp.le.s32.totalorder 1, %s11
    %p140 = scmp.lt.s32.totalorder %s11, 9
    %p141 = pnand %p139, %p140
    %p142 = pneg %p141
    // Predicated region
    $region9: #{residual_identity_block.6} parent=5 // pred_check
      _
    $region10: #{residual_identity_block.6} parent=5 // pred_check_branch
      %144 = sbr.rel (%p141) target = $region12
    $region11: #{residual_identity_block.6} parent=5 // pred_region
      %s145 = ssub.s32 %s11, 1
      // Predicated region
      $region13: #{residual_identity_block.6} parent=11 // pred_check
        %p146 = pneg %p58
      $region14: #{residual_identity_block.6} parent=11 // pred_check_branch
        %148 = sbr.rel (%p146) target = $region16
      $region15: #{residual_identity_block.6} parent=11 // pred_region
        _
      $region16: #{residual_identity_block.6} parent=11 // pred_fallthru
        _
      // Predicated region
      $region17: #{residual_identity_block.6} parent=11 // pred_check
        %p149 = pneg %p79
      $region18: #{residual_identity_block.6} parent=11 // pred_check_branch
        %151 = sbr.rel (%p149) target = $region20
      $region19: #{residual_identity_block.6} parent=11 // pred_region
        _
      $region20: #{residual_identity_block.6} parent=11 // pred_fallthru
        _
    $region12: #{residual_identity_block.6} parent=5 // pred_fallthru
      _
    %p152 = scmp.lt.s32.totalorder %s11, 8
    // Predicated region
    $region21: #{residual_identity_block.6} parent=5 // pred_check
      %p153 = pneg %p152
    $region22: #{residual_identity_block.6} parent=5 // pred_check_branch
      %155 = sbr.rel (%p153) target = $region24
    $region23: #{residual_identity_block.6} parent=5 // pred_region
      // Predicated region
      $region25: #{residual_identity_block.6} parent=23 // pred_check
        %p156 = pneg %p31
      $region26: #{residual_identity_block.6} parent=23 // pred_check_branch
        %158 = sbr.rel (%p156) target = $region28
      $region27: #{residual_identity_block.6} parent=23 // pred_region
        %p159 = scmp.lt.s32.totalorder %s11, 7
        %s160 = scalar_select %p159, %s11, 7
        %s161 = smul.addr %s160, 3
        %s162 = smul.addr %s161, 8
        %s163 = scalar_lea.vmem %s0, %s162
      $region28: #{residual_identity_block.6} parent=23 // pred_fallthru
        _
    $region24: #{residual_identity_block.6} parent=5 // pred_fallthru
      _
    %p164 = scmp.le.s32.totalorder 1, %s11
    %p165 = scmp.lt.s32.totalorder %s11, 9
    %p166 = pnand %p164, %p165
    %p167 = pneg %p166
    // Predicated region
    $region29: #{residual_identity_block.6} parent=5 // pred_check
      _
    $region30: #{residual_identity_block.6} parent=5 // pred_check_branch
      %169 = sbr.rel (%p166) target = $region32
    $region31: #{residual_identity_block.6} parent=5 // pred_region
      %s170 = ssub.s32 %s11, 1
      %p171 = scmp.lt.s32.totalorder %s16, 7
      %s172 = scalar_select %p171, %s16, 7
      %s173 = smul.addr %s172, 3
      %s174 = smul.addr %s173, 8
      %s175 = scalar_lea.vmem %s0, %s174
      %p176 = pneg %p37
      %p177 = pneg %p34
      %p178 = pneg %p58
      %p179 = pneg %p55
      %p180 = pneg %p79
      %p181 = pneg %p76
      %p182 = pneg %p105
      %p183 = pneg %p102
      %p184 = scmp.lt.s32.totalorder %s16, 7
      %s185 = scalar_select %p184, %s16, 7
      %s186 = smul.addr %s185, 8
      %s187 = scalar_lea.vmem %s3, %s186
      %p188 = pneg %p131
      %p189 = pneg %p128
      %p190 = scmp.lt.s32.totalorder %s16, 7
      %s191 = scalar_select %p190, %s16, 7
      %s192 = smul.addr %s191, 2
      %s193 = smul.addr %s192, 8
      %s194 = scalar_lea.vmem %s4, %s193
      %p195 = scmp.lt.s32.totalorder %s16, 7
      %s196 = scalar_select %p195, %s16, 7
      %s197 = smul.addr %s196, 3
      %s198 = smul.addr %s197, 8
      %s199 = scalar_lea.vmem %s0, %s198
      %p200 = scmp.lt.s32.totalorder %s16, 7
      %s201 = scalar_select %p200, %s16, 7
      %s202 = smul.addr %s201, 8
      %s203 = scalar_lea.vmem %s3, %s202
      %p204 = scmp.lt.s32.totalorder %s16, 7
      %s205 = scalar_select %p204, %s16, 7
      %s206 = smul.addr %s205, 2
      %s207 = smul.addr %s206, 8
      %s208 = scalar_lea.vmem %s4, %s207
      %v209 = vld [vmem:[%s199] sm:$0xff]
      %v210 = vld [vmem:[%s199 + $0x8] sm:$0xff]
      %v211 = vld [vmem:[%s199 + $0x10] sm:$0xff]
      %v212 = vld [vmem:[%s1] sm:$0xff]
      %v213 = vld [vmem:[%s1 + $0x8] sm:$0xff]
      %v214 = vld [vmem:[%s1 + $0x10] sm:$0xff]
      %216 = vset.pattern.permute.xlu0 0
      %217 = vperm.xlu0 %216, %v212
      %v218 = vpop.permute.xlu0 %217
      %221 = vset.pattern.permute.xlu0 0
      %222 = vperm.xlu0 %221, %v213
      %v223 = vpop.permute.xlu0 %222
      %226 = vset.pattern.permute.xlu0 0
      %227 = vperm.xlu0 %226, %v214
      %v228 = vpop.permute.xlu0 %227
      %v230 = vmul.f32 %v209, %v218
      %v231 = vmul.f32 %v210, %v223
      %v232 = vmul.f32 %v211, %v228
      %v233 = vld [vmem:[%s2] sm:$0xff]
      %v234 = vld [vmem:[%s2 + $0x8] sm:$0xff]
      %v235 = vld [vmem:[%s2 + $0x10] sm:$0xff]
      %237 = vset.pattern.permute.xlu0 0
      %238 = vperm.xlu0 %237, %v233
      %v239 = vpop.permute.xlu0 %238
      %242 = vset.pattern.permute.xlu0 0
      %243 = vperm.xlu0 %242, %v234
      %v244 = vpop.permute.xlu0 %243
      %247 = vset.pattern.permute.xlu0 0
      %248 = vperm.xlu0 %247, %v235
      %v249 = vpop.permute.xlu0 %248
      %v251 = vadd.f32 %v230, %v239
      %v252 = vadd.f32 %v231, %v244
      %v253 = vadd.f32 %v232, %v249
      %v254 = vmax.f32 %v251, 0.0
      %vm255 = vcmask 523264
      %256 = vst.msk [vmem:[%s203] sm:$0xff] %vm255, %v254
      %257 = vst.msk [vmem:[%s208] sm:$0xff] %vm255, %v252
      %258 = vst.msk [vmem:[%s208 + $0x8] sm:$0xff] %vm255, %v253
      %p259 = scmp.lt.s32.totalorder %s16, 7
      %s260 = scalar_select %p259, %s16, 7
      %s261 = smul.addr %s260, 8
      %s262 = scalar_lea.vmem %s3, %s261
      %p263 = scmp.lt.s32.totalorder %s16, 7
      %s264 = scalar_select %p263, %s16, 7
      %s265 = smul.addr %s264, 2
      %s266 = smul.addr %s265, 8
      %s267 = scalar_lea.vmem %s4, %s266
      // Predicated region
      $region33: #{residual_identity_block.6} parent=31 // pred_check
        %p268 = pneg %p102
      $region34: #{residual_identity_block.6} parent=31 // pred_check_branch
        %270 = sbr.rel (%p268) target = $region36
      $region35: #{residual_identity_block.6} parent=31 // pred_region
        _
      $region36: #{residual_identity_block.6} parent=31 // pred_fallthru
        _
      // Predicated region
      $region37: #{residual_identity_block.6} parent=31 // pred_check
        %p271 = pneg %p128
      $region38: #{residual_identity_block.6} parent=31 // pred_check_branch
        %273 = sbr.rel (%p271) target = $region40
      $region39: #{residual_identity_block.6} parent=31 // pred_region
        _
      $region40: #{residual_identity_block.6} parent=31 // pred_fallthru
        _
    $region32: #{residual_identity_block.6} parent=5 // pred_fallthru
      _
    %p274 = scmp.le.s32.totalorder 2, %s11
    // Predicated region
    $region41: #{residual_identity_block.6} parent=5 // pred_check
      %p275 = pneg %p274
    $region42: #{residual_identity_block.6} parent=5 // pred_check_branch
      %277 = sbr.rel (%p275) target = $region44
    $region43: #{residual_identity_block.6} parent=5 // pred_region
      %s278 = ssub.s32 %s11, 2
      // Predicated region
      $region45: #{residual_identity_block.6} parent=43 // pred_check
        %p279 = pneg %p108
      $region46: #{residual_identity_block.6} parent=43 // pred_check_branch
        %281 = sbr.rel (%p279) target = $region48
      $region47: #{residual_identity_block.6} parent=43 // pred_region
        %p282 = scmp.lt.s32.totalorder %s17, 7
        %s283 = scalar_select %p282, %s17, 7
        %s284 = smul.addr %s283, 8
        %s285 = scalar_lea.vmem %s3, %s284
      $region48: #{residual_identity_block.6} parent=43 // pred_fallthru
        _
      // Predicated region
      $region49: #{residual_identity_block.6} parent=43 // pred_check
        %p286 = pneg %p134
      $region50: #{residual_identity_block.6} parent=43 // pred_check_branch
        %288 = sbr.rel (%p286) target = $region52
      $region51: #{residual_identity_block.6} parent=43 // pred_region
        %p289 = scmp.lt.s32.totalorder %s17, 7
        %s290 = scalar_select %p289, %s17, 7
        %s291 = smul.addr %s290, 2
        %s292 = smul.addr %s291, 8
        %s293 = scalar_lea.vmem %s4, %s292
      $region52: #{residual_identity_block.6} parent=43 // pred_fallthru
        _
    $region44: #{residual_identity_block.6} parent=5 // pred_fallthru
      _
  $region6: #{residual_identity_block.6} parent=0 // loop_footer
    %s15 = sadd.s32 1, %s11
  $region7: #{residual_identity_block.6} parent=0 // loop_footer_branch
    %10 = sbr.rel target = $region3
  $region8: #{residual_identity_block.6} parent=0 // loop_exit
    _

// kernel: residual_identity_block.5
$region0: #{residual_identity_block.5}
  #allocation0 [shape = 'u32[]', space=smem, size = 0x4, offset = 0x4, fixed_abs, tag = 'smem constant byte address 0x4 - core index']
  #allocation1 [shape = 'u32[144,128]{1,0:T(1,128)}', space=vmem, size = 0x12000, scoped, tag = 'internal scratch']
  %s0 = inlined_call_operand.vmem [shape: f32[8,4,64], index: 0, kind: input, shape index: {}]
  %s1 = inlined_call_operand.vmem [shape: f32[24,4], index: 1, kind: input, shape index: {}]
  %s2 = inlined_call_operand.vmem [shape: f32[8,24,64], index: 2, kind: output, shape index: {0}]
  %s3 = inlined_call_operand.vmem [shape: f32[8,24,2], index: 3, kind: output, shape index: {1}]
  %4 = xla_tuple %s2, %s3
  %s5 = sld [smem:[#allocation0]]
  $region49: #{residual_identity_block.5} parent=0
    _
  %s7 = ssub.s32 1, %s5
  %s8 = scalar_select 0, %s7, %s5
  loop: start=0, step=1, limit=10
  $region2: #{residual_identity_block.5} parent=0 // loop_pre_header
    _
  $region3: #{residual_identity_block.5} parent=0 // loop_header
    %s10 = sphi 0, %s14
    %p11 = scmp.ge.s32.totalorder %s10, 10
    %s20 = sphi 0, %s22
    %s23 = sphi 0, %s20
    %s24 = sphi 0, %s23
    %s40 = sphi 0, %s24
    %s44 = sphi 0, %s44
    %s46 = sphi 0, %s44
    %s47 = sphi 0, %s46
    %s61 = sphi 0, %s47
    %s67 = sphi 0, %s69
    %s70 = sphi 0, %s67
    %s71 = sphi 0, %s70
    %s87 = sphi 0, %s71
    %s93 = sphi 0, %s95
    %s96 = sphi 0, %s93
    %s97 = sphi 0, %s96
    %s113 = sphi 0, %s97
  $region4: #{residual_identity_block.5} parent=0 // loop_header_branch
    %13 = sbr.rel (%p11) target = $region8
  $region5: #{residual_identity_block.5} parent=0 // loop_body
    %s15 = ssub.s32 %s10, 1
    %s16 = ssub.s32 %s10, 2
    %s17 = sadd.s32 %s10, 1
    %s18 = ssub.s32 %s10, %s17
    %p19 = scmp.eq.s32.totalorder %s18, 0
    %s21 = sadd.s32 %s20, 1
    %s22 = scalar_select %p19, %s20, %s21
    %p25 = pneg %p19
    %p26 = scmp.eq.s32.totalorder %s10, 7
    %p27 = por %p25, %p26
    %p28 = scmp.ne.s32.totalorder %s20, %s23
    %p29 = scmp.eq.s32.totalorder %s10, 0
    %p30 = por %p28, %p29
    %p31 = scmp.ne.s32.totalorder %s20, %s23
    %p32 = scmp.eq.s32.totalorder %s15, 7
    %p33 = por %p31, %p32
    %p34 = scmp.ne.s32.totalorder %s23, %s24
    %p35 = scmp.eq.s32.totalorder %s15, 0
    %p36 = por %p34, %p35
    %p37 = scmp.ne.s32.totalorder %s23, %s24
    %p38 = scmp.eq.s32.totalorder %s16, 7
    %p39 = por %p37, %p38
    %p41 = scmp.ne.s32.totalorder %s24, %s40
    %p42 = scmp.eq.s32.totalorder %s16, 0
    %p43 = por %p41, %p42
    %s45 = sadd.s32 %s44, 1
    %p48 = scmp.eq.s32.totalorder %s10, 7
    %p49 = scmp.ne.s32.totalorder %s44, %s46
    %p50 = scmp.eq.s32.totalorder %s10, 0
    %p51 = por %p49, %p50
    %p52 = scmp.ne.s32.totalorder %s44, %s46
    %p53 = scmp.eq.s32.totalorder %s15, 7
    %p54 = por %p52, %p53
    %p55 = scmp.ne.s32.totalorder %s46, %s47
    %p56 = scmp.eq.s32.totalorder %s15, 0
    %p57 = por %p55, %p56
    %p58 = scmp.ne.s32.totalorder %s46, %s47
    %p59 = scmp.eq.s32.totalorder %s16, 7
    %p60 = por %p58, %p59
    %p62 = scmp.ne.s32.totalorder %s47, %s61
    %p63 = scmp.eq.s32.totalorder %s16, 0
    %p64 = por %p62, %p63
    %s65 = ssub.s32 %s10, %s17
    %p66 = scmp.eq.s32.totalorder %s65, 0
    %s68 = sadd.s32 %s67, 1
    %s69 = scalar_select %p66, %s67, %s68
    %p72 = pneg %p66
    %p73 = scmp.eq.s32.totalorder %s10, 7
    %p74 = por %p72, %p73
    %p75 = scmp.ne.s32.totalorder %s67, %s70
    %p76 = scmp.eq.s32.totalorder %s10, 0
    %p77 = por %p75, %p76
    %p78 = scmp.ne.s32.totalorder %s67, %s70
    %p79 = scmp.eq.s32.totalorder %s15, 7
    %p80 = por %p78, %p79
    %p81 = scmp.ne.s32.totalorder %s70, %s71
    %p82 = scmp.eq.s32.totalorder %s15, 0
    %p83 = por %p81, %p82
    %p84 = scmp.ne.s32.totalorder %s70, %s71
    %p85 = scmp.eq.s32.totalorder %s16, 7
    %p86 = por %p84, %p85
    %p88 = scmp.ne.s32.totalorder %s71, %s87
    %p89 = scmp.eq.s32.totalorder %s16, 0
    %p90 = por %p88, %p89
    %s91 = ssub.s32 %s10, %s17
    %p92 = scmp.eq.s32.totalorder %s91, 0
    %s94 = sadd.s32 %s93, 1
    %s95 = scalar_select %p92, %s93, %s94
    %p98 = pneg %p92
    %p99 = scmp.eq.s32.totalorder %s10, 7
    %p100 = por %p98, %p99
    %p101 = scmp.ne.s32.totalorder %s93, %s96
    %p102 = scmp.eq.s32.totalorder %s10, 0
    %p103 = por %p101, %p102
    %p104 = scmp.ne.s32.totalorder %s93, %s96
    %p105 = scmp.eq.s32.totalorder %s15, 7
    %p106 = por %p104, %p105
    %p107 = scmp.ne.s32.totalorder %s96, %s97
    %p108 = scmp.eq.s32.totalorder %s15, 0
    %p109 = por %p107, %p108
    %p110 = scmp.ne.s32.totalorder %s96, %s97
    %p111 = scmp.eq.s32.totalorder %s16, 7
    %p112 = por %p110, %p111
    %p114 = scmp.ne.s32.totalorder %s97, %s113
    %p115 = scmp.eq.s32.totalorder %s16, 0
    %p116 = por %p114, %p115
    %p117 = scmp.le.s32.totalorder 1, %s10
    %p118 = scmp.lt.s32.totalorder %s10, 9
    %p119 = pnand %p117, %p118
    %p120 = pneg %p119
    // Predicated region
    $region9: #{residual_identity_block.5} parent=5 // pred_check
      _
    $region10: #{residual_identity_block.5} parent=5 // pred_check_branch
      %122 = sbr.rel (%p119) target = $region12
    $region11: #{residual_identity_block.5} parent=5 // pred_region
      %s123 = ssub.s32 %s10, 1
      // Predicated region
      $region13: #{residual_identity_block.5} parent=11 // pred_check
        %p124 = pneg %p57
      $region14: #{residual_identity_block.5} parent=11 // pred_check_branch
        %126 = sbr.rel (%p124) target = $region16
      $region15: #{residual_identity_block.5} parent=11 // pred_region
        _
      $region16: #{residual_identity_block.5} parent=11 // pred_fallthru
        _
    $region12: #{residual_identity_block.5} parent=5 // pred_fallthru
      _
    %p127 = scmp.lt.s32.totalorder %s10, 8
    // Predicated region
    $region17: #{residual_identity_block.5} parent=5 // pred_check
      %p128 = pneg %p127
    $region18: #{residual_identity_block.5} parent=5 // pred_check_branch
      %130 = sbr.rel (%p128) target = $region20
    $region19: #{residual_identity_block.5} parent=5 // pred_region
      // Predicated region
      $region21: #{residual_identity_block.5} parent=19 // pred_check
        %p131 = pneg %p30
      $region22: #{residual_identity_block.5} parent=19 // pred_check_branch
        %133 = sbr.rel (%p131) target = $region24
      $region23: #{residual_identity_block.5} parent=19 // pred_region
        %p134 = scmp.lt.s32.totalorder %s10, 7
        %s135 = scalar_select %p134, %s10, 7
        %s136 = smul.addr %s135, 4
        %s137 = scalar_lea.vmem %s0, %s136
      $region24: #{residual_identity_block.5} parent=19 // pred_fallthru
        _
    $region20: #{residual_identity_block.5} parent=5 // pred_fallthru
      _
    %p138 = scmp.le.s32.totalorder 1, %s10
    %p139 = scmp.lt.s32.totalorder %s10, 9
    %p140 = pnand %p138, %p139
    %p141 = pneg %p140
    // Predicated region
    $region25: #{residual_identity_block.5} parent=5 // pred_check
      _
    $region26: #{residual_identity_block.5} parent=5 // pred_check_branch
      %143 = sbr.rel (%p140) target = $region28
    $region27: #{residual_identity_block.5} parent=5 // pred_region
      %s144 = ssub.s32 %s10, 1
      %p145 = scmp.lt.s32.totalorder %s15, 7
      %s146 = scalar_select %p145, %s15, 7
      %s147 = smul.addr %s146, 4
      %s148 = scalar_lea.vmem %s0, %s147
      %p149 = pneg %p36
      %p150 = pneg %p33
      %p151 = pneg %p57
      %p152 = pneg %p54
      %p153 = pneg %p83
      %p154 = pneg %p80
      %p155 = scmp.lt.s32.totalorder %s15, 7
      %s156 = scalar_select %p155, %s15, 7
      %s157 = smul.addr %s156, 3
      %s158 = smul.addr %s157, 8
      %s159 = scalar_lea.vmem %s2, %s158
      %p160 = pneg %p109
      %p161 = pneg %p106
      %p162 = scmp.lt.s32.totalorder %s15, 7
      %s163 = scalar_select %p162, %s15, 7
      %s164 = smul.addr %s163, 3
      %s165 = smul.addr %s164, 8
      %s166 = scalar_lea.vmem %s3, %s165
      %p167 = scmp.lt.s32.totalorder %s15, 7
      %s168 = scalar_select %p167, %s15, 7
      %s169 = smul.addr %s168, 4
      %s170 = scalar_lea.vmem %s0, %s169
      %p171 = scmp.lt.s32.totalorder %s15, 7
      %s172 = scalar_select %p171, %s15, 7
      %s173 = smul.addr %s172, 3
      %s174 = smul.addr %s173, 8
      %s175 = scalar_lea.vmem %s2, %s174
      %p176 = scmp.lt.s32.totalorder %s15, 7
      %s177 = scalar_select %p176, %s15, 7
      %s178 = smul.addr %s177, 3
      %s179 = smul.addr %s178, 8
      %s180 = scalar_lea.vmem %s3, %s179
      %v181 = vld [vmem:[%s170] sm:$0xf]
      %v182 = vld [vmem:[%s1] sm:$0xff]
      %v183 = vld [vmem:[%s1 + $0x8] sm:$0xff]
      %v184 = vld [vmem:[%s1 + $0x10] sm:$0xff]
      %vm185 = vcmask 31744
      %v187 = vsel %vm185, %v182, 0
      %v190 = vsel %vm185, %v183, 0
      %v193 = vsel %vm185, %v184, 0
      %vm195 = vcmask 1043456
      %v197 = vsel %vm195, %v181, 0
      %199 = vmatprep.subr.mxu0 0.0
      %200 = vmatpush1.msra.mxu0 %v197
      %201 = vmatprep.subr.mxu0 0.0
      %202 = vmatpush1.msra.mxu0 0.0
      %203 = vmatprep.subr.mxu0 0.0
      %204 = vmatpush1.msra.mxu0 0.0
      %205 = vmatprep.subr.mxu0 0.0
      %206 = vmatpush1.msra.mxu0 0.0
      %207 = vmatprep.subr.mxu0 0.0
      %208 = vmatpush1.msra.mxu0 0.0
      %209 = vmatprep.subr.mxu0 0.0
      %210 = vmatpush1.msra.mxu0 0.0
      %211 = vmatprep.subr.mxu0 0.0
      %212 = vmatpush1.msra.mxu0 0.0
      %213 = vmatprep.subr.mxu0 0.0
      %214 = vmatpush1.msra.mxu0 0.0
      %215 = vmatprep.subr.mxu0 0.0
      %216 = vmatpush1.msra.mxu0 0.0
      %217 = vmatprep.subr.mxu0 0.0
      %218 = vmatpush1.msra.mxu0 0.0
      %219 = vmatprep.subr.mxu0 0.0
      %220 = vmatpush1.msra.mxu0 0.0
      %221 = vmatprep.subr.mxu0 0.0
      %222 = vmatpush1.msra.mxu0 0.0
      %223 = vmatprep.subr.mxu0 0.0
      %224 = vmatpush1.msra.mxu0 0.0
      %225 = vmatprep.subr.mxu0 0.0
      %226 = vmatpush1.msra.mxu0 0.0
      %227 = vmatprep.subr.mxu0 0.0
      %228 = vmatpush1.msra.mxu0 0.0
      %229 = vmatprep.subr.mxu0 0.0
      %230 = vmatpush1.msra.mxu0 0.0
      %231 = vmatprep.subr.mxu0 0.0
      %232 = vmatpush1.msra.mxu0 0.0
      %233 = vmatprep.subr.mxu0 0.0
      %234 = vmatpush1.msra.mxu0 0.0
      %235 = vmatprep.subr.mxu0 0.0
      %236 = vmatpush1.msra.mxu0 0.0
      %237 = vmatprep.subr.mxu0 0.0
      %238 = vmatpush1.msra.mxu0 0.0
      %239 = vmatprep.subr.mxu0 0.0
      %240 = vmatpush1.msra.mxu0 0.0
      %241 = vmatprep.subr.mxu0 0.0
      %242 = vmatpush1.msra.mxu0 0.0
      %243 = vmatprep.subr.mxu0 0.0
      %244 = vmatpush1.msra.mxu0 0.0
      %245 = vmatprep.subr.mxu0 0.0
      %246 = vmatpush1.msra.mxu0 0.0
      %247 = vmatprep.subr.mxu0 0.0
      %248 = vmatpush1.msra.mxu0 0.0
      %249 = vmatprep.subr.mxu0 0.0
      %250 = vmatpush1.msra.mxu0 0.0
      %251 = vmatprep.subr.mxu0 0.0
      %252 = vmatpush1.msra.mxu0 0.0
      %253 = vmatprep.subr.mxu0 0.0
      %254 = vmatpush1.msra.mxu0 0.0
      %255 = vmatprep.subr.mxu0 0.0
      %256 = vmatpush1.msra.mxu0 0.0
      %257 = vmatprep.subr.mxu0 0.0
      %258 = vmatpush1.msra.mxu0 0.0
      %259 = vmatprep.subr.mxu0 0.0
      %260 = vmatpush1.msra.mxu0 0.0
      %261 = vmatprep.subr.mxu0 0.0
      %262 = vmatpush1.msra.mxu0 0.0
      %263 = vmatprep.mubr.f32.mxu0 0.0
      %264 = vmatmul.mubr.f32.gmra.mrb[0].mxu0 %v187
      %v265 = vpop.f32.mrb[0].mxu0
      %v266 = vadd.f32 0.0, %v265
      %v267 = vpop.f32.mrb[0].mxu0
      %268 = vmatprep.mubr.f32.mxu0 0.0
      %269 = vmatmul.mubr.f32.gmra.mrb[0].mxu0 %v190
      %v270 = vpop.f32.mrb[0].mxu0
      %v271 = vadd.f32 0.0, %v270
      %v272 = vpop.f32.mrb[0].mxu0
      %273 = vmatprep.mubr.f32.mxu0 0.0
      %274 = vmatmul.mubr.f32.gmra.mrb[0].mxu0 %v193
      %v275 = vpop.f32.mrb[0].mxu0
      %v276 = vadd.f32 0.0, %v275
      %v277 = vpop.f32.mrb[0].mxu0
      %278 = vdwg.mxu0
      %vm279 = vcmask 523264
      %280 = vst.msk [vmem:[%s175] sm:$0xff] %vm279, %v266
      %281 = vst.msk [vmem:[%s175 + $0x8] sm:$0xff] %vm279, %v271
      %282 = vst.msk [vmem:[%s175 + $0x10] sm:$0xff] %vm279, %v276
      %v283 = vsel %vm279, %v266, 0.0
      %284 = vadd.xlane.f32.xlu0 %v283
      %v285 = vpop.xlane.xlu0 %284
      %v286 = vsel %vm279, %v271, 0.0
      %287 = vadd.xlane.f32.xlu0 %v286
      %v288 = vpop.xlane.xlu0 %287
      %v289 = vsel %vm279, %v276, 0.0
      %290 = vadd.xlane.f32.xlu0 %v289
      %v291 = vpop.xlane.xlu0 %290
      %v292 = vmul.f32 %v266, %v266
      %v293 = vmul.f32 %v271, %v271
      %v294 = vmul.f32 %v276, %v276
      %v295 = vsel %vm279, %v292, 0.0
      %296 = vadd.xlane.f32.xlu0 %v295
      %v297 = vpop.xlane.xlu0 %296
      %v298 = vsel %vm279, %v293, 0.0
      %299 = vadd.xlane.f32.xlu0 %v298
      %v300 = vpop.xlane.xlu0 %299
      %v301 = vsel %vm279, %v294, 0.0
      %302 = vadd.xlane.f32.xlu0 %v301
      %v303 = vpop.xlane.xlu0 %302
      %vm304 = vcmask 7168
      %v305 = vsel %vm304, %v285, %v297
      %v306 = vsel %vm304, %v288, %v300
      %v307 = vsel %vm304, %v291, %v303
      %vm308 = vcmask 15360
      %309 = vst.msk [vmem:[%s180] sm:$0xff] %vm308, %v305
      %310 = vst.msk [vmem:[%s180 + $0x8] sm:$0xff] %vm308, %v306
      %311 = vst.msk [vmem:[%s180 + $0x10] sm:$0xff] %vm308, %v307
      %p312 = scmp.lt.s32.totalorder %s15, 7
      %s313 = scalar_select %p312, %s15, 7
      %s314 = smul.addr %s313, 3
      %s315 = smul.addr %s314, 8
      %s316 = scalar_lea.vmem %s2, %s315
      %p317 = scmp.lt.s32.totalorder %s15, 7
      %s318 = scalar_select %p317, %s15, 7
      %s319 = smul.addr %s318, 3
      %s320 = smul.addr %s319, 8
      %s321 = scalar_lea.vmem %s3, %s320
      // Predicated region
      $region29: #{residual_identity_block.5} parent=27 // pred_check
        %p322 = pneg %p80
      $region30: #{residual_identity_block.5} parent=27 // pred_check_branch
        %324 = sbr.rel (%p322) target = $region32
      $region31: #{residual_identity_block.5} parent=27 // pred_region
        _
      $region32: #{residual_identity_block.5} parent=27 // pred_fallthru
        _
      // Predicated region
      $region33: #{residual_identity_block.5} parent=27 // pred_check
        %p325 = pneg %p106
      $region34: #{residual_identity_block.5} parent=27 // pred_check_branch
        %327 = sbr.rel (%p325) target = $region36
      $region35: #{residual_identity_block.5} parent=27 // pred_region
        _
      $region36: #{residual_identity_block.5} parent=27 // pred_fallthru
        _
    $region28: #{residual_identity_block.5} parent=5 // pred_fallthru
      _
    %p328 = scmp.le.s32.totalorder 2, %s10
    // Predicated region
    $region37: #{residual_identity_block.5} parent=5 // pred_check
      %p329 = pneg %p328
    $region38: #{residual_identity_block.5} parent=5 // pred_check_branch
      %331 = sbr.rel (%p329) target = $region40
    $region39: #{residual_identity_block.5} parent=5 // pred_region
      %s332 = ssub.s32 %s10, 2
      // Predicated region
      $region41: #{residual_identity_block.5} parent=39 // pred_check
        %p333 = pneg %p86
      $region42: #{residual_identity_block.5} parent=39 // pred_check_branch
        %335 = sbr.rel (%p333) target = $region44
      $region43: #{residual_identity_block.5} parent=39 // pred_region
        %p336 = scmp.lt.s32.totalorder %s16, 7
        %s337 = scalar_select %p336, %s16, 7
        %s338 = smul.addr %s337, 3
        %s339 = smul.addr %s338, 8
        %s340 = scalar_lea.vmem %s2, %s339
      $region44: #{residual_identity_block.5} parent=39 // pred_fallthru
        _
      // Predicated region
      $region45: #{residual_identity_block.5} parent=39 // pred_check
        %p341 = pneg %p112
      $region46: #{residual_identity_block.5} parent=39 // pred_check_branch
        %343 = sbr.rel (%p341) target = $region48
      $region47: #{residual_identity_block.5} parent=39 // pred_region
        %p344 = scmp.lt.s32.totalorder %s16, 7
        %s345 = scalar_select %p344, %s16, 7
        %s346 = smul.addr %s345, 3
        %s347 = smul.addr %s346, 8
        %s348 = scalar_lea.vmem %s3, %s347
      $region48: #{residual_identity_block.5} parent=39 // pred_fallthru
        _
    $region40: #{residual_identity_block.5} parent=5 // pred_fallthru
      _
  $region6: #{residual_identity_block.5} parent=0 // loop_footer
    %s14 = sadd.s32 1, %s10
  $region7: #{residual_identity_block.5} parent=0 // loop_footer_branch
    %9 = sbr.rel target = $region3
  $region8: #{residual_identity_block.5} parent=0 // loop_exit
    _

// kernel: residual_identity_block.7
$region0: #{residual_identity_block.7}
  #allocation0 [shape = 'u32[]', space=smem, size = 0x4, offset = 0x4, fixed_abs, tag = 'smem constant byte address 0x4 - core index']
  #allocation1 [shape = 'u32[144,128]{1,0:T(1,128)}', space=vmem, size = 0x12000, scoped, tag = 'internal scratch']
  %s0 = inlined_call_operand.vmem [shape: f32[2,6,3,8,80], index: 0, kind: input, shape index: {}, may-alias: {0,1,2}]
  %s1 = inlined_call_operand.vmem [shape: f32[2,6,3,8,80], index: 1, kind: input, shape index: {}, may-alias: {0,1,2}]
  %s2 = inlined_call_operand.vmem [shape: f32[2,6,3,8,80], index: 2, kind: input, shape index: {}, may-alias: {0,1,2}]
  %s3 = inlined_call_operand.vmem [shape: f32[8,216], index: 3, kind: input, shape index: {}]
  %s4 = inlined_call_operand.vmem [shape: f32[2,4,8,64], index: 4, kind: output, shape index: {0}]
  %s5 = inlined_call_operand.vmem [shape: f32[2,4,8,2], index: 5, kind: output, shape index: {1}]
  %6 = xla_tuple %s4, %s5
  %s7 = sld [smem:[#allocation0]]
  $region57: #{residual_identity_block.7} parent=0
    _
  %s9 = ssub.s32 1, %s7
  %s10 = scalar_select 0, %s9, %s7
  loop: start=0, step=1, limit=10
  $region2: #{residual_identity_block.7} parent=0 // loop_pre_header
    _
  $region3: #{residual_identity_block.7} parent=0 // loop_header
    %s12 = sphi 0, %s16
    %p13 = scmp.ge.s32.totalorder %s12, 10
    %s19 = sphi 0, %s31
    %s20 = sphi 0, %s27
    %s21 = sphi 0, %s19
    %s22 = sphi 0, %s20
    %s23 = sphi 0, %s21
    %s24 = sphi 0, %s22
    %s36 = sphi 0, %s38
    %s39 = sphi 0, %s36
    %s40 = sphi 0, %s39
    %s56 = sphi 0, %s40
    %s66 = sphi 0, %s68
    %s69 = sphi 0, %s66
    %s70 = sphi 0, %s69
    %s86 = sphi 0, %s70
    %s96 = sphi 0, %s98
    %s99 = sphi 0, %s96
    %s100 = sphi 0, %s99
    %s116 = sphi 0, %s100
    %s120 = sphi 0, %s120
    %s122 = sphi 0, %s120
    %s123 = sphi 0, %s122
    %s137 = sphi 0, %s123
    %s145 = sphi 0, %s147
    %s148 = sphi 0, %s145
    %s149 = sphi 0, %s148
    %s165 = sphi 0, %s149
    %s173 = sphi 0, %s175
    %s176 = sphi 0, %s173
    %s177 = sphi 0, %s176
    %s193 = sphi 0, %s177
  $region4: #{residual_identity_block.7} parent=0 // loop_header_branch
    %15 = sbr.rel (%p13) target = $region8
  $region5: #{residual_identity_block.7} parent=0 // loop_body
    %s17 = ssub.s32 %s12, 1
    %s18 = ssub.s32 %s12, 2
    %s25 = sadd.s32 1, %s20
    %p26 = scmp.ge.s32.totalorder %s25, 4
    %s27 = scalar_select %p26, 0, %s25
    %s28 = sadd.s32 1, %s19
    %s29 = scalar_select %p26, %s28, %s19
    %p30 = scmp.ge.s32.totalorder %s29, 2
    %s31 = scalar_select %p30, 0, %s29
    %s32 = ssub.s32 %s19, %s31
    %s33 = ssub.s32 %s20, %s27
    %s34 = sor.u32 %s32, %s33
    %p35 = scmp.eq.s32.totalorder %s34, 0
    %s37 = sadd.s32 %s36, 1
    %s38 = scalar_select %p35, %s36, %s37
    %p41 = pneg %p35
    %p42 = scmp.eq.s32.totalorder %s12, 7
    %p43 = por %p41, %p42
    %p44 = scmp.ne.s32.totalorder %s36, %s39
    %p45 = scmp.eq.s32.totalorder %s12, 0
    %p46 = por %p44, %p45
    %p47 = scmp.ne.s32.totalorder %s36, %s39
    %p48 = scmp.eq.s32.totalorder %s17, 7
    %p49 = por %p47, %p48
    %p50 = scmp.ne.s32.totalorder %s39, %s40
    %p51 = scmp.eq.s32.totalorder %s17, 0
    %p52 = por %p50, %p51
    %p53 = scmp.ne.s32.totalorder %s39, %s40
    %p54 = scmp.eq.s32.totalorder %s18, 7
    %p55 = por %p53, %p54
    %p57 = scmp.ne.s32.totalorder %s40, %s56
    %p58 = scmp.eq.s32.totalorder %s18, 0
    %p59 = por %p57, %p58
    %s60 = sadd.s32 %s20, 1
    %s61 = sadd.s32 %s27, 1
    %s62 = ssub.s32 %s19, %s31
    %s63 = ssub.s32 %s60, %s61
    %s64 = sor.u32 %s62, %s63
    %p65 = scmp.eq.s32.totalorder %s64, 0
    %s67 = sadd.s32 %s66, 1
    %s68 = scalar_select %p65, %s66, %s67
    %p71 = pneg %p65
    %p72 = scmp.eq.s32.totalorder %s12, 7
    %p73 = por %p71, %p72
    %p74 = scmp.ne.s32.totalorder %s66, %s69
    %p75 = scmp.eq.s32.totalorder %s12, 0
    %p76 = por %p74, %p75
    %p77 = scmp.ne.s32.totalorder %s66, %s69
    %p78 = scmp.eq.s32.totalorder %s17, 7
    %p79 = por %p77, %p78
    %p80 = scmp.ne.s32.totalorder %s69, %s70
    %p81 = scmp.eq.s32.totalorder %s17, 0
    %p82 = por %p80, %p81
    %p83 = scmp.ne.s32.totalorder %s69, %s70
    %p84 = scmp.eq.s32.totalorder %s18, 7
    %p85 = por %p83, %p84
    %p87 = scmp.ne.s32.totalorder %s70, %s86
    %p88 = scmp.eq.s32.totalorder %s18, 0
    %p89 = por %p87, %p88
    %s90 = sadd.s32 %s20, 2
    %s91 = sadd.s32 %s27, 2
    %s92 = ssub.s32 %s19, %s31
    %s93 = ssub.s32 %s90, %s91
    %s94 = sor.u32 %s92, %s93
    %p95 = scmp.eq.s32.totalorder %s94, 0
    %s97 = sadd.s32 %s96, 1
    %s98 = scalar_select %p95, %s96, %s97
    %p101 = pneg %p95
    %p102 = scmp.eq.s32.totalorder %s12, 7
    %p103 = por %p101, %p102
    %p104 = scmp.ne.s32.totalorder %s96, %s99
    %p105 = scmp.eq.s32.totalorder %s12, 0
    %p106 = por %p104, %p105
    %p107 = scmp.ne.s32.totalorder %s96, %s99
    %p108 = scmp.eq.s32.totalorder %s17, 7
    %p109 = por %p107, %p108
    %p110 = scmp.ne.s32.totalorder %s99, %s100
    %p111 = scmp.eq.s32.totalorder %s17, 0
    %p112 = por %p110, %p111
    %p113 = scmp.ne.s32.totalorder %s99, %s100
    %p114 = scmp.eq.s32.totalorder %s18, 7
    %p115 = por %p113, %p114
    %p117 = scmp.ne.s32.totalorder %s100, %s116
    %p118 = scmp.eq.s32.totalorder %s18, 0
    %p119 = por %p117, %p118
    %s121 = sadd.s32 %s120, 1
    %p124 = scmp.eq.s32.totalorder %s12, 7
    %p125 = scmp.ne.s32.totalorder %s120, %s122
    %p126 = scmp.eq.s32.totalorder %s12, 0
    %p127 = por %p125, %p126
    %p128 = scmp.ne.s32.totalorder %s120, %s122
    %p129 = scmp.eq.s32.totalorder %s17, 7
    %p130 = por %p128, %p129
    %p131 = scmp.ne.s32.totalorder %s122, %s123
    %p132 = scmp.eq.s32.totalorder %s17, 0
    %p133 = por %p131, %p132
    %p134 = scmp.ne.s32.totalorder %s122, %s123
    %p135 = scmp.eq.s32.totalorder %s18, 7
    %p136 = por %p134, %p135
    %p138 = scmp.ne.s32.totalorder %s123, %s137
    %p139 = scmp.eq.s32.totalorder %s18, 0
    %p140 = por %p138, %p139
    %s141 = ssub.s32 %s19, %s31
    %s142 = ssub.s32 %s20, %s27
    %s143 = sor.u32 %s141, %s142
    %p144 = scmp.eq.s32.totalorder %s143, 0
    %s146 = sadd.s32 %s145, 1
    %s147 = scalar_select %p144, %s145, %s146
    %p150 = pneg %p144
    %p151 = scmp.eq.s32.totalorder %s12, 7
    %p152 = por %p150, %p151
    %p153 = scmp.ne.s32.totalorder %s145, %s148
    %p154 = scmp.eq.s32.totalorder %s12, 0
    %p155 = por %p153, %p154
    %p156 = scmp.ne.s32.totalorder %s145, %s148
    %p157 = scmp.eq.s32.totalorder %s17, 7
    %p158 = por %p156, %p157
    %p159 = scmp.ne.s32.totalorder %s148, %s149
    %p160 = scmp.eq.s32.totalorder %s17, 0
    %p161 = por %p159, %p160
    %p162 = scmp.ne.s32.totalorder %s148, %s149
    %p163 = scmp.eq.s32.totalorder %s18, 7
    %p164 = por %p162, %p163
    %p166 = scmp.ne.s32.totalorder %s149, %s165
    %p167 = scmp.eq.s32.totalorder %s18, 0
    %p168 = por %p166, %p167
    %s169 = ssub.s32 %s19, %s31
    %s170 = ssub.s32 %s20, %s27
    %s171 = sor.u32 %s169, %s170
    %p172 = scmp.eq.s32.totalorder %s171, 0
    %s174 = sadd.s32 %s173, 1
    %s175 = scalar_select %p172, %s173, %s174
    %p178 = pneg %p172
    %p179 = scmp.eq.s32.totalorder %s12, 7
    %p180 = por %p178, %p179
    %p181 = scmp.ne.s32.totalorder %s173, %s176
    %p182 = scmp.eq.s32.totalorder %s12, 0
    %p183 = por %p181, %p182
    %p184 = scmp.ne.s32.totalorder %s173, %s176
    %p185 = scmp.eq.s32.totalorder %s17, 7
    %p186 = por %p184, %p185
    %p187 = scmp.ne.s32.totalorder %s176, %s177
    %p188 = scmp.eq.s32.totalorder %s17, 0
    %p189 = por %p187, %p188
    %p190 = scmp.ne.s32.totalorder %s176, %s177
    %p191 = scmp.eq.s32.totalorder %s18, 7
    %p192 = por %p190, %p191
    %p194 = scmp.ne.s32.totalorder %s177, %s193
    %p195 = scmp.eq.s32.totalorder %s18, 0
    %p196 = por %p194, %p195
    %p197 = scmp.le.s32.totalorder 1, %s12
    %p198 = scmp.lt.s32.totalorder %s12, 9
    %p199 = pnand %p197, %p198
    %p200 = pneg %p199
    // Predicated region
    $region9: #{residual_identity_block.7} parent=5 // pred_check
      _
    $region10: #{residual_identity_block.7} parent=5 // pred_check_branch
      %202 = sbr.rel (%p199) target = $region12
    $region11: #{residual_identity_block.7} parent=5 // pred_region
      %s203 = ssub.s32 %s12, 1
      // Predicated region
      $region13: #{residual_identity_block.7} parent=11 // pred_check
        %p204 = pneg %p133
      $region14: #{residual_identity_block.7} parent=11 // pred_check_branch
        %206 = sbr.rel (%p204) target = $region16
      $region15: #{residual_identity_block.7} parent=11 // pred_region
        _
      $region16: #{residual_identity_block.7} parent=11 // pred_fallthru
        _
    $region12: #{residual_identity_block.7} parent=5 // pred_fallthru
      _
    %p207 = scmp.lt.s32.totalorder %s12, 8
    // Predicated region
    $region17: #{residual_identity_block.7} parent=5 // pred_check
      %p208 = pneg %p207
    $region18: #{residual_identity_block.7} parent=5 // pred_check_branch
      %210 = sbr.rel (%p208) target = $region20
    $region19: #{residual_identity_block.7} parent=5 // pred_region
      // Predicated region
      $region21: #{residual_identity_block.7} parent=19 // pred_check
        %p211 = pneg %p46
      $region22: #{residual_identity_block.7} parent=19 // pred_check_branch
        %213 = sbr.rel (%p211) target = $region24
      $region23: #{residual_identity_block.7} parent=19 // pred_region
        %p214 = scmp.lt.s32.totalorder %s19, 1
        %s215 = scalar_select %p214, %s19, 1
        %p216 = scmp.lt.s32.totalorder %s20, 5
        %s217 = scalar_select %p216, %s20, 5
        %s218 = smul.addr %s217, 3
        %s219 = smul.addr %s215, 18
        %s220 = sadd.s32 %s218, %s219
        %s221 = smul.addr %s220, 8
        %s222 = scalar_lea.vmem %s0, %s221
      $region24: #{residual_identity_block.7} parent=19 // pred_fallthru
        _
      // Predicated region
      $region25: #{residual_identity_block.7} parent=19 // pred_check
        %p223 = pneg %p76
      $region26: #{residual_identity_block.7} parent=19 // pred_check_branch
        %225 = sbr.rel (%p223) target = $region28
      $region27: #{residual_identity_block.7} parent=19 // pred_region
        %s226 = sadd.s32 %s20, 1
        %p227 = scmp.lt.s32.totalorder %s19, 1
        %s228 = scalar_select %p227, %s19, 1
        %p229 = scmp.lt.s32.totalorder %s226, 5
        %s230 = scalar_select %p229, %s226, 5
        %s231 = smul.addr %s230, 3
        %s232 = smul.addr %s228, 18
        %s233 = sadd.s32 %s231, %s232
        %s234 = smul.addr %s233, 8
        %s235 = scalar_lea.vmem %s1, %s234
        %s236 = sadd.s32 %s20, 1
      $region28: #{residual_identity_block.7} parent=19 // pred_fallthru
        _
      // Predicated region
      $region29: #{residual_identity_block.7} parent=19 // pred_check
        %p237 = pneg %p106
      $region30: #{residual_identity_block.7} parent=19 // pred_check_branch
        %239 = sbr.rel (%p237) target = $region32
      $region31: #{residual_identity_block.7} parent=19 // pred_region
        %s240 = sadd.s32 %s20, 2
        %p241 = scmp.lt.s32.totalorder %s19, 1
        %s242 = scalar_select %p241, %s19, 1
        %p243 = scmp.lt.s32.totalorder %s240, 5
        %s244 = scalar_select %p243, %s240, 5
        %s245 = smul.addr %s244, 3
        %s246 = smul.addr %s242, 18
        %s247 = sadd.s32 %s245, %s246
        %s248 = smul.addr %s247, 8
        %s249 = scalar_lea.vmem %s2, %s248
        %s250 = sadd.s32 %s20, 2
      $region32: #{residual_identity_block.7} parent=19 // pred_fallthru
        _
    $region20: #{residual_identity_block.7} parent=5 // pred_fallthru
      _
    %p251 = scmp.le.s32.totalorder 1, %s12
    %p252 = scmp.lt.s32.totalorder %s12, 9
    %p253 = pnand %p251, %p252
    %p254 = pneg %p253
    // Predicated region
    $region33: #{residual_identity_block.7} parent=5 // pred_check
      _
    $region34: #{residual_identity_block.7} parent=5 // pred_check_branch
      %256 = sbr.rel (%p253) target = $region36
    $region35: #{residual_identity_block.7} parent=5 // pred_region
      %s257 = ssub.s32 %s12, 1
      %p258 = scmp.lt.s32.totalorder %s21, 1
      %s259 = scalar_select %p258, %s21, 1
      %p260 = scmp.lt.s32.totalorder %s22, 5
      %s261 = scalar_select %p260, %s22, 5
      %s262 = smul.addr %s261, 3
      %s263 = smul.addr %s259, 18
      %s264 = sadd.s32 %s262, %s263
      %s265 = smul.addr %s264, 8
      %s266 = scalar_lea.vmem %s0, %s265
      %p267 = pneg %p52
      %p268 = pneg %p49
      %s269 = sadd.s32 %s22, 1
      %p270 = scmp.lt.s32.totalorder %s21, 1
      %s271 = scalar_select %p270, %s21, 1
      %p272 = scmp.lt.s32.totalorder %s269, 5
      %s273 = scalar_select %p272, %s269, 5
      %s274 = smul.addr %s273, 3
      %s275 = smul.addr %s271, 18
      %s276 = sadd.s32 %s274, %s275
      %s277 = smul.addr %s276, 8
      %s278 = scalar_lea.vmem %s1, %s277
      %p279 = pneg %p82
      %p280 = pneg %p79
      %s281 = sadd.s32 %s22, 2
      %p282 = scmp.lt.s32.totalorder %s21, 1
      %s283 = scalar_select %p282, %s21, 1
      %p284 = scmp.lt.s32.totalorder %s281, 5
      %s285 = scalar_select %p284, %s281, 5
      %s286 = smul.addr %s285, 3
      %s287 = smul.addr %s283, 18
      %s288 = sadd.s32 %s286, %s287
      %s289 = smul.addr %s288, 8
      %s290 = scalar_lea.vmem %s2, %s289
      %p291 = pneg %p112
      %p292 = pneg %p109
      %p293 = pneg %p133
      %p294 = pneg %p130
      %p295 = pneg %p161
      %p296 = pneg %p158
      %p297 = scmp.lt.s32.totalorder %s21, 1
      %s298 = scalar_select %p297, %s21, 1
      %p299 = scmp.lt.s32.totalorder %s22, 3
      %s300 = scalar_select %p299, %s22, 3
      %s301 = smul.addr %s298, 4
      %s302 = sadd.s32 %s300, %s301
      %s303 = smul.addr %s302, 8
      %s304 = scalar_lea.vmem %s4, %s303
      %p305 = pneg %p189
      %p306 = pneg %p186
      %p307 = scmp.lt.s32.totalorder %s21, 1
      %s308 = scalar_select %p307, %s21, 1
      %p309 = scmp.lt.s32.totalorder %s22, 3
      %s310 = scalar_select %p309, %s22, 3
      %s311 = smul.addr %s308, 4
      %s312 = sadd.s32 %s310, %s311
      %s313 = smul.addr %s312, 8
      %s314 = scalar_lea.vmem %s5, %s313
      %p315 = scmp.lt.s32.totalorder %s21, 1
      %s316 = scalar_select %p315, %s21, 1
      %p317 = scmp.lt.s32.totalorder %s22, 5
      %s318 = scalar_select %p317, %s22, 5
      %s319 = smul.addr %s318, 3
      %s320 = smul.addr %s316, 18
      %s321 = sadd.s32 %s319, %s320
      %s322 = smul.addr %s321, 8
      %s323 = scalar_lea.vmem %s0, %s322
      %s324 = sadd.s32 %s22, 1
      %p325 = scmp.lt.s32.totalorder %s21, 1
      %s326 = scalar_select %p325, %s21, 1
      %p327 = scmp.lt.s32.totalorder %s324, 5
      %s328 = scalar_select %p327, %s324, 5
      %s329 = smul.addr %s328, 3
      %s330 = smul.addr %s326, 18
      %s331 = sadd.s32 %s329, %s330
      %s332 = smul.addr %s331, 8
      %s333 = scalar_lea.vmem %s1, %s332
      %s334 = sadd.s32 %s22, 1
      %s335 = sadd.s32 %s22, 2
      %p336 = scmp.lt.s32.totalorder %s21, 1
      %s337 = scalar_select %p336, %s21, 1
      %p338 = scmp.lt.s32.totalorder %s335, 5
      %s339 = scalar_select %p338, %s335, 5
      %s340 = smul.addr %s339, 3
      %s341 = smul.addr %s337, 18
      %s342 = sadd.s32 %s340, %s341
      %s343 = smul.addr %s342, 8
      %s344 = scalar_lea.vmem %s2, %s343
      %s345 = sadd.s32 %s22, 2
      %p346 = scmp.lt.s32.totalorder %s21, 1
      %s347 = scalar_select %p346, %s21, 1
      %p348 = scmp.lt.s32.totalorder %s22, 3
      %s349 = scalar_select %p348, %s22, 3
      %s350 = smul.addr %s347, 4
      %s351 = sadd.s32 %s349, %s350
      %s352 = smul.addr %s351, 8
      %s353 = scalar_lea.vmem %s4, %s352
      %p354 = scmp.lt.s32.totalorder %s21, 1
      %s355 = scalar_select %p354, %s21, 1
      %p356 = scmp.lt.s32.totalorder %s22, 3
      %s357 = scalar_select %p356, %s22, 3
      %s358 = smul.addr %s355, 4
      %s359 = sadd.s32 %s357, %s358
      %s360 = smul.addr %s359, 8
      %s361 = scalar_lea.vmem %s5, %s360
      %v362 = vld [vmem:[%s323] sm:$0xff]
      %s363 = scalar_lea.vmem %s323, 8
      %v364 = vld [vmem:[%s363] sm:$0xff]
      %s365 = scalar_lea.vmem %s323, 16
      %v366 = vld [vmem:[%s365] sm:$0xff]
      %v367 = vld [vmem:[%s333] sm:$0xff]
      %s368 = scalar_lea.vmem %s333, 8
      %v369 = vld [vmem:[%s368] sm:$0xff]
      %s370 = scalar_lea.vmem %s333, 16
      %v371 = vld [vmem:[%s370] sm:$0xff]
      %v372 = vld [vmem:[%s344] sm:$0xff]
      %s373 = scalar_lea.vmem %s344, 8
      %v374 = vld [vmem:[%s373] sm:$0xff]
      %s375 = scalar_lea.vmem %s344, 16
      %v376 = vld [vmem:[%s375] sm:$0xff]
      %378 = vrot.lane.b32.xlu0 %v362, 120
      %v379 = vpop.permute.xlu0 %378
      %382 = vrot.lane.b32.xlu0 %v364, 120
      %v383 = vpop.permute.xlu0 %382
      %386 = vrot.lane.b32.xlu0 %v366, 120
      %v387 = vpop.permute.xlu0 %386
      %389 = vrot.lane.b32.xlu0 %v362, 112
      %v390 = vpop.permute.xlu0 %389
      %392 = vrot.lane.b32.xlu0 %v364, 112
      %v393 = vpop.permute.xlu0 %392
      %395 = vrot.lane.b32.xlu0 %v366, 112
      %v396 = vpop.permute.xlu0 %395
      %399 = vrot.lane.b32.xlu0 %v367, 120
      %v400 = vpop.permute.xlu0 %399
      %403 = vrot.lane.b32.xlu0 %v369, 120
      %v404 = vpop.permute.xlu0 %403
      %407 = vrot.lane.b32.xlu0 %v371, 120
      %v408 = vpop.permute.xlu0 %407
      %410 = vrot.lane.b32.xlu0 %v367, 112
      %v411 = vpop.permute.xlu0 %410
      %414 = vrot.lane.b32.xlu0 %v372, 16
      %v415 = vpop.permute.xlu0 %414
      %417 = vrot.lane.b32.xlu0 %v374, 16
      %v418 = vpop.permute.xlu0 %417
      %420 = vrot.lane.b32.xlu0 %v376, 16
      %v421 = vpop.permute.xlu0 %420
      %422 = vrot.lane.b32.xlu0 %v372, 8
      %v423 = vpop.permute.xlu0 %422
      %424 = vrot.lane.b32.xlu0 %v374, 8
      %v425 = vpop.permute.xlu0 %424
      %426 = vrot.lane.b32.xlu0 %v376, 8
      %v427 = vpop.permute.xlu0 %426
      %428 = vrot.lane.b32.xlu0 %v369, 112
      %v429 = vpop.permute.xlu0 %428
      %430 = vrot.lane.b32.xlu0 %v371, 112
      %v431 = vpop.permute.xlu0 %430
      %432 = vrot.lane.b32.xlu0 %v415, 112
      %v433 = vpop.permute.xlu0 %432
      %434 = vrot.lane.b32.xlu0 %v418, 112
      %v435 = vpop.permute.xlu0 %434
      %436 = vrot.lane.b32.xlu0 %v421, 112
      %v437 = vpop.permute.xlu0 %436
      %438 = vrot.lane.b32.xlu0 %v423, 112
      %v439 = vpop.permute.xlu0 %438
      %440 = vrot.lane.b32.xlu0 %v425, 112
      %v441 = vpop.permute.xlu0 %440
      %442 = vrot.lane.b32.xlu0 %v427, 112
      %v443 = vpop.permute.xlu0 %442
      %444 = vrot.lane.b32.xlu0 %v372, 112
      %v445 = vpop.permute.xlu0 %444
      %446 = vrot.lane.b32.xlu0 %v374, 112
      %v447 = vpop.permute.xlu0 %446
      %448 = vrot.lane.b32.xlu0 %v376, 112
      %v449 = vpop.permute.xlu0 %448
      %v461 = vld [vmem:[%s3] sm:$0xff]
      %v462 = vld [vmem:[%s3 + $0x8] sm:$0xff]
      %vm463 = vcmask 719872
      %v465 = vsel %vm463, %v462, 0
      %467 = vmatprep.subr.mxu0 0.0
      %468 = vmatpush1.msra.mxu0 %v362
      %469 = vmatprep.subr.mxu0 0.0
      %470 = vmatpush1.msra.mxu0 %v364
      %471 = vmatprep.subr.mxu0 0.0
      %472 = vmatpush1.msra.mxu0 %v366
      %473 = vmatprep.subr.mxu0 0.0
      %474 = vmatpush1.msra.mxu0 %v379
      %475 = vmatprep.subr.mxu0 0.0
      %476 = vmatpush1.msra.mxu0 %v383
      %477 = vmatprep.subr.mxu0 0.0
      %478 = vmatpush1.msra.mxu0 %v387
      %479 = vmatprep.subr.mxu0 0.0
      %480 = vmatpush1.msra.mxu0 %v390
      %481 = vmatprep.subr.mxu0 0.0
      %482 = vmatpush1.msra.mxu0 %v393
      %483 = vmatprep.subr.mxu0 0.0
      %484 = vmatpush1.msra.mxu0 %v396
      %485 = vmatprep.subr.mxu0 0.0
      %486 = vmatpush1.msra.mxu0 %v367
      %487 = vmatprep.subr.mxu0 0.0
      %488 = vmatpush1.msra.mxu0 %v369
      %489 = vmatprep.subr.mxu0 0.0
      %490 = vmatpush1.msra.mxu0 %v371
      %491 = vmatprep.subr.mxu0 0.0
      %492 = vmatpush1.msra.mxu0 %v400
      %493 = vmatprep.subr.mxu0 0.0
      %494 = vmatpush1.msra.mxu0 %v404
      %495 = vmatprep.subr.mxu0 0.0
      %496 = vmatpush1.msra.mxu0 %v408
      %497 = vmatprep.subr.mxu0 0.0
      %498 = vmatpush1.msra.mxu0 %v411
      %499 = vmatprep.subr.mxu0 0.0
      %500 = vmatpush1.msra.mxu0 %v429
      %501 = vmatprep.subr.mxu0 0.0
      %502 = vmatpush1.msra.mxu0 %v431
      %503 = vmatprep.subr.mxu0 0.0
      %504 = vmatpush1.msra.mxu0 %v433
      %505 = vmatprep.subr.mxu0 0.0
      %506 = vmatpush1.msra.mxu0 %v435
      %507 = vmatprep.subr.mxu0 0.0
      %508 = vmatpush1.msra.mxu0 %v437
      %509 = vmatprep.subr.mxu0 0.0
      %510 = vmatpush1.msra.mxu0 %v439
      %511 = vmatprep.subr.mxu0 0.0
      %512 = vmatpush1.msra.mxu0 %v441
      %513 = vmatprep.subr.mxu0 0.0
      %514 = vmatpush1.msra.mxu0 %v443
      %515 = vmatprep.subr.mxu0 0.0
      %516 = vmatpush1.msra.mxu0 %v445
      %517 = vmatprep.subr.mxu0 0.0
      %518 = vmatpush1.msra.mxu0 %v447
      %519 = vmatprep.subr.mxu0 0.0
      %520 = vmatpush1.msra.mxu0 %v449
      %521 = vmatprep.subr.mxu0 0.0
      %522 = vmatpush1.msra.mxu0 0.0
      %523 = vmatprep.subr.mxu0 0.0
      %524 = vmatpush1.msra.mxu0 0.0
      %525 = vmatprep.subr.mxu0 0.0
      %526 = vmatpush1.msra.mxu0 0.0
      %527 = vmatprep.subr.mxu0 0.0
      %528 = vmatpush1.msra.mxu0 0.0
      %529 = vmatprep.subr.mxu0 0.0
      %530 = vmatpush1.msra.mxu0 0.0
      %531 = vmatprep.mubr.f32.mxu0 %v465
      %532 = vmatmul.mubr.f32.gmra.mrb[0].mxu0 %v461
      %v533 = vpop.f32.mrb[0].mxu0
      %v534 = vadd.f32 0.0, %v533
      %v535 = vpop.f32.mrb[0].mxu0
      %536 = vdwg.mxu0
      %vm537 = vcmask 523264
      %538 = vst.msk [vmem:[%s353] sm:$0xff] %vm537, %v534
      %v539 = vsel %vm537, %v534, 0.0
      %540 = vadd.xlane.f32.xlu0 %v539
      %v541 = vpop.xlane.xlu0 %540
      %v542 = vmul.f32 %v534, %v534
      %v543 = vsel %vm537, %v542, 0.0
      %544 = vadd.xlane.f32.xlu0 %v543
      %v545 = vpop.xlane.xlu0 %544
      %vm546 = vcmask 7168
      %v547 = vsel %vm546, %v541, %v545
      %vm548 = vcmask 15360
      %549 = vst.msk [vmem:[%s361] sm:$0xff] %vm548, %v547
      %p550 = scmp.lt.s32.totalorder %s21, 1
      %s551 = scalar_select %p550, %s21, 1
      %p552 = scmp.lt.s32.totalorder %s22, 3
      %s553 = scalar_select %p552, %s22, 3
      %s554 = smul.addr %s551, 4
      %s555 = sadd.s32 %s553, %s554
      %s556 = smul.addr %s555, 8
      %s557 = scalar_lea.vmem %s4, %s556
      %p558 = scmp.lt.s32.totalorder %s21, 1
      %s559 = scalar_select %p558, %s21, 1
      %p560 = scmp.lt.s32.totalorder %s22, 3
      %s561 = scalar_select %p560, %s22, 3
      %s562 = smul.addr %s559, 4
      %s563 = sadd.s32 %s561, %s562
      %s564 = smul.addr %s563, 8
      %s565 = scalar_lea.vmem %s5, %s564
      // Predicated region
      $region37: #{residual_identity_block.7} parent=35 // pred_check
        %p566 = pneg %p158
      $region38: #{residual_identity_block.7} parent=35 // pred_check_branch
        %568 = sbr.rel (%p566) target = $region40
      $region39: #{residual_identity_block.7} parent=35 // pred_region
        _
      $region40: #{residual_identity_block.7} parent=35 // pred_fallthru
        _
      // Predicated region
      $region41: #{residual_identity_block.7} parent=35 // pred_check
        %p569 = pneg %p186
      $region42: #{residual_identity_block.7} parent=35 // pred_check_branch
        %571 = sbr.rel (%p569) target = $region44
      $region43: #{residual_identity_block.7} parent=35 // pred_region
        _
      $region44: #{residual_identity_block.7} parent=35 // pred_fallthru
        _
    $region36: #{residual_identity_block.7} parent=5 // pred_fallthru
      _
    %p572 = scmp.le.s32.totalorder 2, %s12
    // Predicated region
    $region45: #{residual_identity_block.7} parent=5 // pred_check
      %p573 = pneg %p572
    $region46: #{residual_identity_block.7} parent=5 // pred_check_branch
      %575 = sbr.rel (%p573) target = $region48
    $region47: #{residual_identity_block.7} parent=5 // pred_region
      %s576 = ssub.s32 %s12, 2
      // Predicated region
      $region49: #{residual_identity_block.7} parent=47 // pred_check
        %p577 = pneg %p164
      $region50: #{residual_identity_block.7} parent=47 // pred_check_branch
        %579 = sbr.rel (%p577) target = $region52
      $region51: #{residual_identity_block.7} parent=47 // pred_region
        %p580 = scmp.lt.s32.totalorder %s23, 1
        %s581 = scalar_select %p580, %s23, 1
        %p582 = scmp.lt.s32.totalorder %s24, 3
        %s583 = scalar_select %p582, %s24, 3
        %s584 = smul.addr %s581, 4
        %s585 = sadd.s32 %s583, %s584
        %s586 = smul.addr %s585, 8
        %s587 = scalar_lea.vmem %s4, %s586
      $region52: #{residual_identity_block.7} parent=47 // pred_fallthru
        _
      // Predicated region
      $region53: #{residual_identity_block.7} parent=47 // pred_check
        %p588 = pneg %p192
      $region54: #{residual_identity_block.7} parent=47 // pred_check_branch
        %590 = sbr.rel (%p588) target = $region56
      $region55: #{residual_identity_block.7} parent=47 // pred_region
        %p591 = scmp.lt.s32.totalorder %s23, 1
        %s592 = scalar_select %p591, %s23, 1
        %p593 = scmp.lt.s32.totalorder %s24, 3
        %s594 = scalar_select %p593, %s24, 3
        %s595 = smul.addr %s592, 4
        %s596 = sadd.s32 %s594, %s595
        %s597 = smul.addr %s596, 8
        %s598 = scalar_lea.vmem %s5, %s597
      $region56: #{residual_identity_block.7} parent=47 // pred_fallthru
        _
    $region48: #{residual_identity_block.7} parent=5 // pred_fallthru
      _
  $region6: #{residual_identity_block.7} parent=0 // loop_footer
    %s16 = sadd.s32 1, %s12
  $region7: #{residual_identity_block.7} parent=0 // loop_footer_branch
    %11 = sbr.rel target = $region3
  $region8: #{residual_identity_block.7} parent=0 // loop_exit
    _

// kernel: residual_identity_block.9
$region0: #{residual_identity_block.9}
  #allocation0 [shape = 'u32[]', space=smem, size = 0x4, offset = 0x4, fixed_abs, tag = 'smem constant byte address 0x4 - core index']
  #allocation1 [shape = 'u32[144,128]{1,0:T(1,128)}', space=vmem, size = 0x12000, scoped, tag = 'internal scratch']
  %s0 = inlined_call_operand.vmem [shape: f32[8,16,64], index: 0, kind: input, shape index: {}]
  %s1 = inlined_call_operand.vmem [shape: f32[16,1], index: 1, kind: input, shape index: {}]
  %s2 = inlined_call_operand.vmem [shape: f32[16,1], index: 2, kind: input, shape index: {}]
  %s3 = inlined_call_operand.vmem [shape: f32[8,16,64], index: 3, kind: input, shape index: {}]
  %s4 = inlined_call_operand.vmem [shape: f32[8,16,64], index: 4, kind: output, shape index: {}]
  %s5 = sld [smem:[#allocation0]]
  $region49: #{residual_identity_block.9} parent=0
    _
  %s7 = ssub.s32 1, %s5
  %s8 = scalar_select 0, %s7, %s5
  loop: start=0, step=1, limit=10
  $region2: #{residual_identity_block.9} parent=0 // loop_pre_header
    _
  $region3: #{residual_identity_block.9} parent=0 // loop_header
    %s10 = sphi 0, %s14
    %p11 = scmp.ge.s32.totalorder %s10, 10
    %s20 = sphi 0, %s22
    %s23 = sphi 0, %s20
    %s24 = sphi 0, %s23
    %s40 = sphi 0, %s24
    %s44 = sphi 0, %s44
    %s46 = sphi 0, %s44
    %s47 = sphi 0, %s46
    %s61 = sphi 0, %s47
    %s65 = sphi 0, %s65
    %s67 = sphi 0, %s65
    %s68 = sphi 0, %s67
    %s82 = sphi 0, %s68
    %s88 = sphi 0, %s90
    %s91 = sphi 0, %s88
    %s92 = sphi 0, %s91
    %s108 = sphi 0, %s92
    %s114 = sphi 0, %s116
    %s117 = sphi 0, %s114
    %s118 = sphi 0, %s117
    %s134 = sphi 0, %s118
  $region4: #{residual_identity_block.9} parent=0 // loop_header_branch
    %13 = sbr.rel (%p11) target = $region8
  $region5: #{residual_identity_block.9} parent=0 // loop_body
    %s15 = ssub.s32 %s10, 1
    %s16 = ssub.s32 %s10, 2
    %s17 = sadd.s32 %s10, 1
    %s18 = ssub.s32 %s10, %s17
    %p19 = scmp.eq.s32.totalorder %s18, 0
    %s21 = sadd.s32 %s20, 1
    %s22 = scalar_select %p19, %s20, %s21
    %p25 = pneg %p19
    %p26 = scmp.eq.s32.totalorder %s10, 7
    %p27 = por %p25, %p26
    %p28 = scmp.ne.s32.totalorder %s20, %s23
    %p29 = scmp.eq.s32.totalorder %s10, 0
    %p30 = por %p28, %p29
    %p31 = scmp.ne.s32.totalorder %s20, %s23
    %p32 = scmp.eq.s32.totalorder %s15, 7
    %p33 = por %p31, %p32
    %p34 = scmp.ne.s32.totalorder %s23, %s24
    %p35 = scmp.eq.s32.totalorder %s15, 0
    %p36 = por %p34, %p35
    %p37 = scmp.ne.s32.totalorder %s23, %s24
    %p38 = scmp.eq.s32.totalorder %s16, 7
    %p39 = por %p37, %p38
    %p41 = scmp.ne.s32.totalorder %s24, %s40
    %p42 = scmp.eq.s32.totalorder %s16, 0
    %p43 = por %p41, %p42
    %s45 = sadd.s32 %s44, 1
    %p48 = scmp.eq.s32.totalorder %s10, 7
    %p49 = scmp.ne.s32.totalorder %s44, %s46
    %p50 = scmp.eq.s32.totalorder %s10, 0
    %p51 = por %p49, %p50
    %p52 = scmp.ne.s32.totalorder %s44, %s46
    %p53 = scmp.eq.s32.totalorder %s15, 7
    %p54 = por %p52, %p53
    %p55 = scmp.ne.s32.totalorder %s46, %s47
    %p56 = scmp.eq.s32.totalorder %s15, 0
    %p57 = por %p55, %p56
    %p58 = scmp.ne.s32.totalorder %s46, %s47
    %p59 = scmp.eq.s32.totalorder %s16, 7
    %p60 = por %p58, %p59
    %p62 = scmp.ne.s32.totalorder %s47, %s61
    %p63 = scmp.eq.s32.totalorder %s16, 0
    %p64 = por %p62, %p63
    %s66 = sadd.s32 %s65, 1
    %p69 = scmp.eq.s32.totalorder %s10, 7
    %p70 = scmp.ne.s32.totalorder %s65, %s67
    %p71 = scmp.eq.s32.totalorder %s10, 0
    %p72 = por %p70, %p71
    %p73 = scmp.ne.s32.totalorder %s65, %s67
    %p74 = scmp.eq.s32.totalorder %s15, 7
    %p75 = por %p73, %p74
    %p76 = scmp.ne.s32.totalorder %s67, %s68
    %p77 = scmp.eq.s32.totalorder %s15, 0
    %p78 = por %p76, %p77
    %p79 = scmp.ne.s32.totalorder %s67, %s68
    %p80 = scmp.eq.s32.totalorder %s16, 7
    %p81 = por %p79, %p80
    %p83 = scmp.ne.s32.totalorder %s68, %s82
    %p84 = scmp.eq.s32.totalorder %s16, 0
    %p85 = por %p83, %p84
    %s86 = ssub.s32 %s10, %s17
    %p87 = scmp.eq.s32.totalorder %s86, 0
    %s89 = sadd.s32 %s88, 1
    %s90 = scalar_select %p87, %s88, %s89
    %p93 = pneg %p87
    %p94 = scmp.eq.s32.totalorder %s10, 7
    %p95 = por %p93, %p94
    %p96 = scmp.ne.s32.totalorder %s88, %s91
    %p97 = scmp.eq.s32.totalorder %s10, 0
    %p98 = por %p96, %p97
    %p99 = scmp.ne.s32.totalorder %s88, %s91
    %p100 = scmp.eq.s32.totalorder %s15, 7
    %p101 = por %p99, %p100
    %p102 = scmp.ne.s32.totalorder %s91, %s92
    %p103 = scmp.eq.s32.totalorder %s15, 0
    %p104 = por %p102, %p103
    %p105 = scmp.ne.s32.totalorder %s91, %s92
    %p106 = scmp.eq.s32.totalorder %s16, 7
    %p107 = por %p105, %p106
    %p109 = scmp.ne.s32.totalorder %s92, %s108
    %p110 = scmp.eq.s32.totalorder %s16, 0
    %p111 = por %p109, %p110
    %s112 = ssub.s32 %s10, %s17
    %p113 = scmp.eq.s32.totalorder %s112, 0
    %s115 = sadd.s32 %s114, 1
    %s116 = scalar_select %p113, %s114, %s115
    %p119 = pneg %p113
    %p120 = scmp.eq.s32.totalorder %s10, 7
    %p121 = por %p119, %p120
    %p122 = scmp.ne.s32.totalorder %s114, %s117
    %p123 = scmp.eq.s32.totalorder %s10, 0
    %p124 = por %p122, %p123
    %p125 = scmp.ne.s32.totalorder %s114, %s117
    %p126 = scmp.eq.s32.totalorder %s15, 7
    %p127 = por %p125, %p126
    %p128 = scmp.ne.s32.totalorder %s117, %s118
    %p129 = scmp.eq.s32.totalorder %s15, 0
    %p130 = por %p128, %p129
    %p131 = scmp.ne.s32.totalorder %s117, %s118
    %p132 = scmp.eq.s32.totalorder %s16, 7
    %p133 = por %p131, %p132
    %p135 = scmp.ne.s32.totalorder %s118, %s134
    %p136 = scmp.eq.s32.totalorder %s16, 0
    %p137 = por %p135, %p136
    %p138 = scmp.le.s32.totalorder 1, %s10
    %p139 = scmp.lt.s32.totalorder %s10, 9
    %p140 = pnand %p138, %p139
    %p141 = pneg %p140
    // Predicated region
    $region9: #{residual_identity_block.9} parent=5 // pred_check
      _
    $region10: #{residual_identity_block.9} parent=5 // pred_check_branch
      %143 = sbr.rel (%p140) target = $region12
    $region11: #{residual_identity_block.9} parent=5 // pred_region
      %s144 = ssub.s32 %s10, 1
      // Predicated region
      $region13: #{residual_identity_block.9} parent=11 // pred_check
        %p145 = pneg %p57
      $region14: #{residual_identity_block.9} parent=11 // pred_check_branch
        %147 = sbr.rel (%p145) target = $region16
      $region15: #{residual_identity_block.9} parent=11 // pred_region
        _
      $region16: #{residual_identity_block.9} parent=11 // pred_fallthru
        _
      // Predicated region
      $region17: #{residual_identity_block.9} parent=11 // pred_check
        %p148 = pneg %p78
      $region18: #{residual_identity_block.9} parent=11 // pred_check_branch
        %150 = sbr.rel (%p148) target = $region20
      $region19: #{residual_identity_block.9} parent=11 // pred_region
        _
      $region20: #{residual_identity_block.9} parent=11 // pred_fallthru
        _
    $region12: #{residual_identity_block.9} parent=5 // pred_fallthru
      _
    %p151 = scmp.lt.s32.totalorder %s10, 8
    // Predicated region
    $region21: #{residual_identity_block.9} parent=5 // pred_check
      %p152 = pneg %p151
    $region22: #{residual_identity_block.9} parent=5 // pred_check_branch
      %154 = sbr.rel (%p152) target = $region24
    $region23: #{residual_identity_block.9} parent=5 // pred_region
      // Predicated region
      $region25: #{residual_identity_block.9} parent=23 // pred_check
        %p155 = pneg %p30
      $region26: #{residual_identity_block.9} parent=23 // pred_check_branch
        %157 = sbr.rel (%p155) target = $region28
      $region27: #{residual_identity_block.9} parent=23 // pred_region
        %p158 = scmp.lt.s32.totalorder %s10, 7
        %s159 = scalar_select %p158, %s10, 7
        %s160 = smul.addr %s159, 2
        %s161 = smul.addr %s160, 8
        %s162 = scalar_lea.vmem %s0, %s161
      $region28: #{residual_identity_block.9} parent=23 // pred_fallthru
        _
      // Predicated region
      $region29: #{residual_identity_block.9} parent=23 // pred_check
        %p163 = pneg %p98
      $region30: #{residual_identity_block.9} parent=23 // pred_check_branch
        %165 = sbr.rel (%p163) target = $region32
      $region31: #{residual_identity_block.9} parent=23 // pred_region
        %p166 = scmp.lt.s32.totalorder %s10, 7
        %s167 = scalar_select %p166, %s10, 7
        %s168 = smul.addr %s167, 2
        %s169 = smul.addr %s168, 8
        %s170 = scalar_lea.vmem %s3, %s169
      $region32: #{residual_identity_block.9} parent=23 // pred_fallthru
        _
    $region24: #{residual_identity_block.9} parent=5 // pred_fallthru
      _
    %p171 = scmp.le.s32.totalorder 1, %s10
    %p172 = scmp.lt.s32.totalorder %s10, 9
    %p173 = pnand %p171, %p172
    %p174 = pneg %p173
    // Predicated region
    $region33: #{residual_identity_block.9} parent=5 // pred_check
      _
    $region34: #{residual_identity_block.9} parent=5 // pred_check_branch
      %176 = sbr.rel (%p173) target = $region36
    $region35: #{residual_identity_block.9} parent=5 // pred_region
      %s177 = ssub.s32 %s10, 1
      %p178 = scmp.lt.s32.totalorder %s15, 7
      %s179 = scalar_select %p178, %s15, 7
      %s180 = smul.addr %s179, 2
      %s181 = smul.addr %s180, 8
      %s182 = scalar_lea.vmem %s0, %s181
      %p183 = pneg %p36
      %p184 = pneg %p33
      %p185 = pneg %p57
      %p186 = pneg %p54
      %p187 = pneg %p78
      %p188 = pneg %p75
      %p189 = scmp.lt.s32.totalorder %s15, 7
      %s190 = scalar_select %p189, %s15, 7
      %s191 = smul.addr %s190, 2
      %s192 = smul.addr %s191, 8
      %s193 = scalar_lea.vmem %s3, %s192
      %p194 = pneg %p104
      %p195 = pneg %p101
      %p196 = pneg %p130
      %p197 = pneg %p127
      %p198 = scmp.lt.s32.totalorder %s15, 7
      %s199 = scalar_select %p198, %s15, 7
      %s200 = smul.addr %s199, 2
      %s201 = smul.addr %s200, 8
      %s202 = scalar_lea.vmem %s4, %s201
      %p203 = scmp.lt.s32.totalorder %s15, 7
      %s204 = scalar_select %p203, %s15, 7
      %s205 = smul.addr %s204, 2
      %s206 = smul.addr %s205, 8
      %s207 = scalar_lea.vmem %s0, %s206
      %p208 = scmp.lt.s32.totalorder %s15, 7
      %s209 = scalar_select %p208, %s15, 7
      %s210 = smul.addr %s209, 2
      %s211 = smul.addr %s210, 8
      %s212 = scalar_lea.vmem %s3, %s211
      %p213 = scmp.lt.s32.totalorder %s15, 7
      %s214 = scalar_select %p213, %s15, 7
      %s215 = smul.addr %s214, 2
      %s216 = smul.addr %s215, 8
      %s217 = scalar_lea.vmem %s4, %s216
      %v218 = vld [vmem:[%s207] sm:$0xff]
      %v219 = vld [vmem:[%s207 + $0x8] sm:$0xff]
      %v220 = vld [vmem:[%s1] sm:$0xff]
      %v221 = vld [vmem:[%s1 + $0x8] sm:$0xff]
      %223 = vset.pattern.permute.xlu0 0
      %224 = vperm.xlu0 %223, %v220
      %v225 = vpop.permute.xlu0 %224
      %228 = vset.pattern.permute.xlu0 0
      %229 = vperm.xlu0 %228, %v221
      %v230 = vpop.permute.xlu0 %229
      %v232 = vmul.f32 %v218, %v225
      %v233 = vmul.f32 %v219, %v230
      %v234 = vld [vmem:[%s2] sm:$0xff]
      %v235 = vld [vmem:[%s2 + $0x8] sm:$0xff]
      %237 = vset.pattern.permute.xlu0 0
      %238 = vperm.xlu0 %237, %v234
      %v239 = vpop.permute.xlu0 %238
      %242 = vset.pattern.permute.xlu0 0
      %243 = vperm.xlu0 %242, %v235
      %v244 = vpop.permute.xlu0 %243
      %v246 = vadd.f32 %v232, %v239
      %v247 = vadd.f32 %v233, %v244
      %v248 = vld [vmem:[%s212] sm:$0xff]
      %v249 = vld [vmem:[%s212 + $0x8] sm:$0xff]
      %v250 = vadd.f32 %v246, %v248
      %v251 = vadd.f32 %v247, %v249
      %vm252 = vcmask 523264
      %253 = vst.msk [vmem:[%s217] sm:$0xff] %vm252, %v250
      %254 = vst.msk [vmem:[%s217 + $0x8] sm:$0xff] %vm252, %v251
      %p255 = scmp.lt.s32.totalorder %s15, 7
      %s256 = scalar_select %p255, %s15, 7
      %s257 = smul.addr %s256, 2
      %s258 = smul.addr %s257, 8
      %s259 = scalar_lea.vmem %s4, %s258
      // Predicated region
      $region37: #{residual_identity_block.9} parent=35 // pred_check
        %p260 = pneg %p127
      $region38: #{residual_identity_block.9} parent=35 // pred_check_branch
        %262 = sbr.rel (%p260) target = $region40
      $region39: #{residual_identity_block.9} parent=35 // pred_region
        _
      $region40: #{residual_identity_block.9} parent=35 // pred_fallthru
        _
    $region36: #{residual_identity_block.9} parent=5 // pred_fallthru
      _
    %p263 = scmp.le.s32.totalorder 2, %s10
    // Predicated region
    $region41: #{residual_identity_block.9} parent=5 // pred_check
      %p264 = pneg %p263
    $region42: #{residual_identity_block.9} parent=5 // pred_check_branch
      %266 = sbr.rel (%p264) target = $region44
    $region43: #{residual_identity_block.9} parent=5 // pred_region
      %s267 = ssub.s32 %s10, 2
      // Predicated region
      $region45: #{residual_identity_block.9} parent=43 // pred_check
        %p268 = pneg %p133
      $region46: #{residual_identity_block.9} parent=43 // pred_check_branch
        %270 = sbr.rel (%p268) target = $region48
      $region47: #{residual_identity_block.9} parent=43 // pred_region
        %p271 = scmp.lt.s32.totalorder %s16, 7
        %s272 = scalar_select %p271, %s16, 7
        %s273 = smul.addr %s272, 2
        %s274 = smul.addr %s273, 8
        %s275 = scalar_lea.vmem %s4, %s274
      $region48: #{residual_identity_block.9} parent=43 // pred_fallthru
        _
    $region44: #{residual_identity_block.9} parent=5 // pred_fallthru
      _
  $region6: #{residual_identity_block.9} parent=0 // loop_footer
    %s14 = sadd.s32 1, %s10
  $region7: #{residual_identity_block.9} parent=0 // loop_footer_branch
    %9 = sbr.rel target = $region3
  $region8: #{residual_identity_block.9} parent=0 // loop_exit
    _

// kernel: residual_identity_block.8
$region0: #{residual_identity_block.8}
  #allocation0 [shape = 'u32[]', space=smem, size = 0x4, offset = 0x4, fixed_abs, tag = 'smem constant byte address 0x4 - core index']
  #allocation1 [shape = 'u32[144,128]{1,0:T(1,128)}', space=vmem, size = 0x12000, scoped, tag = 'internal scratch']
  %s0 = inlined_call_operand.vmem [shape: f32[8,8,64], index: 0, kind: input, shape index: {}]
  %s1 = inlined_call_operand.vmem [shape: f32[16,8], index: 1, kind: input, shape index: {}]
  %s2 = inlined_call_operand.vmem [shape: f32[8,1], index: 2, kind: input, shape index: {}]
  %s3 = inlined_call_operand.vmem [shape: f32[8,1], index: 3, kind: input, shape index: {}]
  %s4 = inlined_call_operand.vmem [shape: f32[8,16,64], index: 4, kind: output, shape index: {0}]
  %s5 = inlined_call_operand.vmem [shape: f32[8,16,2], index: 5, kind: output, shape index: {1}]
  %6 = xla_tuple %s4, %s5
  %s7 = sld [smem:[#allocation0]]
  $region57: #{residual_identity_block.8} parent=0
    _
  %s9 = ssub.s32 1, %s7
  %s10 = scalar_select 0, %s9, %s7
  loop: start=0, step=1, limit=10
  $region2: #{residual_identity_block.8} parent=0 // loop_pre_header
    _
  $region3: #{residual_identity_block.8} parent=0 // loop_header
    %s12 = sphi 0, %s16
    %p13 = scmp.ge.s32.totalorder %s12, 10
    %s22 = sphi 0, %s24
    %s25 = sphi 0, %s22
    %s26 = sphi 0, %s25
    %s42 = sphi 0, %s26
    %s46 = sphi 0, %s46
    %s48 = sphi 0, %s46
    %s49 = sphi 0, %s48
    %s63 = sphi 0, %s49
    %s67 = sphi 0, %s67
    %s69 = sphi 0, %s67
    %s70 = sphi 0, %s69
    %s84 = sphi 0, %s70
    %s88 = sphi 0, %s88
    %s90 = sphi 0, %s88
    %s91 = sphi 0, %s90
    %s105 = sphi 0, %s91
    %s111 = sphi 0, %s113
    %s114 = sphi 0, %s111
    %s115 = sphi 0, %s114
    %s131 = sphi 0, %s115
    %s137 = sphi 0, %s139
    %s140 = sphi 0, %s137
    %s141 = sphi 0, %s140
    %s157 = sphi 0, %s141
  $region4: #{residual_identity_block.8} parent=0 // loop_header_branch
    %15 = sbr.rel (%p13) target = $region8
  $region5: #{residual_identity_block.8} parent=0 // loop_body
    %s17 = ssub.s32 %s12, 1
    %s18 = ssub.s32 %s12, 2
    %s19 = sadd.s32 %s12, 1
    %s20 = ssub.s32 %s12, %s19
    %p21 = scmp.eq.s32.totalorder %s20, 0
    %s23 = sadd.s32 %s22, 1
    %s24 = scalar_select %p21, %s22, %s23
    %p27 = pneg %p21
    %p28 = scmp.eq.s32.totalorder %s12, 7
    %p29 = por %p27, %p28
    %p30 = scmp.ne.s32.totalorder %s22, %s25
    %p31 = scmp.eq.s32.totalorder %s12, 0
    %p32 = por %p30, %p31
    %p33 = scmp.ne.s32.totalorder %s22, %s25
    %p34 = scmp.eq.s32.totalorder %s17, 7
    %p35 = por %p33, %p34
    %p36 = scmp.ne.s32.totalorder %s25, %s26
    %p37 = scmp.eq.s32.totalorder %s17, 0
    %p38 = por %p36, %p37
    %p39 = scmp.ne.s32.totalorder %s25, %s26
    %p40 = scmp.eq.s32.totalorder %s18, 7
    %p41 = por %p39, %p40
    %p43 = scmp.ne.s32.totalorder %s26, %s42
    %p44 = scmp.eq.s32.totalorder %s18, 0
    %p45 = por %p43, %p44
    %s47 = sadd.s32 %s46, 1
    %p50 = scmp.eq.s32.totalorder %s12, 7
    %p51 = scmp.ne.s32.totalorder %s46, %s48
    %p52 = scmp.eq.s32.totalorder %s12, 0
    %p53 = por %p51, %p52
    %p54 = scmp.ne.s32.totalorder %s46, %s48
    %p55 = scmp.eq.s32.totalorder %s17, 7
    %p56 = por %p54, %p55
    %p57 = scmp.ne.s32.totalorder %s48, %s49
    %p58 = scmp.eq.s32.totalorder %s17, 0
    %p59 = por %p57, %p58
    %p60 = scmp.ne.s32.totalorder %s48, %s49
    %p61 = scmp.eq.s32.totalorder %s18, 7
    %p62 = por %p60, %p61
    %p64 = scmp.ne.s32.totalorder %s49, %s63
    %p65 = scmp.eq.s32.totalorder %s18, 0
    %p66 = por %p64, %p65
    %s68 = sadd.s32 %s67, 1
    %p71 = scmp.eq.s32.totalorder %s12, 7
    %p72 = scmp.ne.s32.totalorder %s67, %s69
    %p73 = scmp.eq.s32.totalorder %s12, 0
    %p74 = por %p72, %p73
    %p75 = scmp.ne.s32.totalorder %s67, %s69
    %p76 = scmp.eq.s32.totalorder %s17, 7
    %p77 = por %p75, %p76
    %p78 = scmp.ne.s32.totalorder %s69, %s70
    %p79 = scmp.eq.s32.totalorder %s17, 0
    %p80 = por %p78, %p79
    %p81 = scmp.ne.s32.totalorder %s69, %s70
    %p82 = scmp.eq.s32.totalorder %s18, 7
    %p83 = por %p81, %p82
    %p85 = scmp.ne.s32.totalorder %s70, %s84
    %p86 = scmp.eq.s32.totalorder %s18, 0
    %p87 = por %p85, %p86
    %s89 = sadd.s32 %s88, 1
    %p92 = scmp.eq.s32.totalorder %s12, 7
    %p93 = scmp.ne.s32.totalorder %s88, %s90
    %p94 = scmp.eq.s32.totalorder %s12, 0
    %p95 = por %p93, %p94
    %p96 = scmp.ne.s32.totalorder %s88, %s90
    %p97 = scmp.eq.s32.totalorder %s17, 7
    %p98 = por %p96, %p97
    %p99 = scmp.ne.s32.totalorder %s90, %s91
    %p100 = scmp.eq.s32.totalorder %s17, 0
    %p101 = por %p99, %p100
    %p102 = scmp.ne.s32.totalorder %s90, %s91
    %p103 = scmp.eq.s32.totalorder %s18, 7
    %p104 = por %p102, %p103
    %p106 = scmp.ne.s32.totalorder %s91, %s105
    %p107 = scmp.eq.s32.totalorder %s18, 0
    %p108 = por %p106, %p107
    %s109 = ssub.s32 %s12, %s19
    %p110 = scmp.eq.s32.totalorder %s109, 0
    %s112 = sadd.s32 %s111, 1
    %s113 = scalar_select %p110, %s111, %s112
    %p116 = pneg %p110
    %p117 = scmp.eq.s32.totalorder %s12, 7
    %p118 = por %p116, %p117
    %p119 = scmp.ne.s32.totalorder %s111, %s114
    %p120 = scmp.eq.s32.totalorder %s12, 0
    %p121 = por %p119, %p120
    %p122 = scmp.ne.s32.totalorder %s111, %s114
    %p123 = scmp.eq.s32.totalorder %s17, 7
    %p124 = por %p122, %p123
    %p125 = scmp.ne.s32.totalorder %s114, %s115
    %p126 = scmp.eq.s32.totalorder %s17, 0
    %p127 = por %p125, %p126
    %p128 = scmp.ne.s32.totalorder %s114, %s115
    %p129 = scmp.eq.s32.totalorder %s18, 7
    %p130 = por %p128, %p129
    %p132 = scmp.ne.s32.totalorder %s115, %s131
    %p133 = scmp.eq.s32.totalorder %s18, 0
    %p134 = por %p132, %p133
    %s135 = ssub.s32 %s12, %s19
    %p136 = scmp.eq.s32.totalorder %s135, 0
    %s138 = sadd.s32 %s137, 1
    %s139 = scalar_select %p136, %s137, %s138
    %p142 = pneg %p136
    %p143 = scmp.eq.s32.totalorder %s12, 7
    %p144 = por %p142, %p143
    %p145 = scmp.ne.s32.totalorder %s137, %s140
    %p146 = scmp.eq.s32.totalorder %s12, 0
    %p147 = por %p145, %p146
    %p148 = scmp.ne.s32.totalorder %s137, %s140
    %p149 = scmp.eq.s32.totalorder %s17, 7
    %p150 = por %p148, %p149
    %p151 = scmp.ne.s32.totalorder %s140, %s141
    %p152 = scmp.eq.s32.totalorder %s17, 0
    %p153 = por %p151, %p152
    %p154 = scmp.ne.s32.totalorder %s140, %s141
    %p155 = scmp.eq.s32.totalorder %s18, 7
    %p156 = por %p154, %p155
    %p158 = scmp.ne.s32.totalorder %s141, %s157
    %p159 = scmp.eq.s32.totalorder %s18, 0
    %p160 = por %p158, %p159
    %p161 = scmp.le.s32.totalorder 1, %s12
    %p162 = scmp.lt.s32.totalorder %s12, 9
    %p163 = pnand %p161, %p162
    %p164 = pneg %p163
    // Predicated region
    $region9: #{residual_identity_block.8} parent=5 // pred_check
      _
    $region10: #{residual_identity_block.8} parent=5 // pred_check_branch
      %166 = sbr.rel (%p163) target = $region12
    $region11: #{residual_identity_block.8} parent=5 // pred_region
      %s167 = ssub.s32 %s12, 1
      // Predicated region
      $region13: #{residual_identity_block.8} parent=11 // pred_check
        %p168 = pneg %p59
      $region14: #{residual_identity_block.8} parent=11 // pred_check_branch
        %170 = sbr.rel (%p168) target = $region16
      $region15: #{residual_identity_block.8} parent=11 // pred_region
        _
      $region16: #{residual_identity_block.8} parent=11 // pred_fallthru
        _
      // Predicated region
      $region17: #{residual_identity_block.8} parent=11 // pred_check
        %p171 = pneg %p80
      $region18: #{residual_identity_block.8} parent=11 // pred_check_branch
        %173 = sbr.rel (%p171) target = $region20
      $region19: #{residual_identity_block.8} parent=11 // pred_region
        _
      $region20: #{residual_identity_block.8} parent=11 // pred_fallthru
        _
      // Predicated region
      $region21: #{residual_identity_block.8} parent=11 // pred_check
        %p174 = pneg %p101
      $region22: #{residual_identity_block.8} parent=11 // pred_check_branch
        %176 = sbr.rel (%p174) target = $region24
      $region23: #{residual_identity_block.8} parent=11 // pred_region
        _
      $region24: #{residual_identity_block.8} parent=11 // pred_fallthru
        _
    $region12: #{residual_identity_block.8} parent=5 // pred_fallthru
      _
    %p177 = scmp.lt.s32.totalorder %s12, 8
    // Predicated region
    $region25: #{residual_identity_block.8} parent=5 // pred_check
      %p178 = pneg %p177
    $region26: #{residual_identity_block.8} parent=5 // pred_check_branch
      %180 = sbr.rel (%p178) target = $region28
    $region27: #{residual_identity_block.8} parent=5 // pred_region
      // Predicated region
      $region29: #{residual_identity_block.8} parent=27 // pred_check
        %p181 = pneg %p32
      $region30: #{residual_identity_block.8} parent=27 // pred_check_branch
        %183 = sbr.rel (%p181) target = $region32
      $region31: #{residual_identity_block.8} parent=27 // pred_region
        %p184 = scmp.lt.s32.totalorder %s12, 7
        %s185 = scalar_select %p184, %s12, 7
        %s186 = smul.addr %s185, 8
        %s187 = scalar_lea.vmem %s0, %s186
      $region32: #{residual_identity_block.8} parent=27 // pred_fallthru
        _
    $region28: #{residual_identity_block.8} parent=5 // pred_fallthru
      _
    %p188 = scmp.le.s32.totalorder 1, %s12
    %p189 = scmp.lt.s32.totalorder %s12, 9
    %p190 = pnand %p188, %p189
    %p191 = pneg %p190
    // Predicated region
    $region33: #{residual_identity_block.8} parent=5 // pred_check
      _
    $region34: #{residual_identity_block.8} parent=5 // pred_check_branch
      %193 = sbr.rel (%p190) target = $region36
    $region35: #{residual_identity_block.8} parent=5 // pred_region
      %s194 = ssub.s32 %s12, 1
      %p195 = scmp.lt.s32.totalorder %s17, 7
      %s196 = scalar_select %p195, %s17, 7
      %s197 = smul.addr %s196, 8
      %s198 = scalar_lea.vmem %s0, %s197
      %p199 = pneg %p38
      %p200 = pneg %p35
      %p201 = pneg %p59
      %p202 = pneg %p56
      %p203 = pneg %p80
      %p204 = pneg %p77
      %p205 = pneg %p101
      %p206 = pneg %p98
      %p207 = pneg %p127
      %p208 = pneg %p124
      %p209 = scmp.lt.s32.totalorder %s17, 7
      %s210 = scalar_select %p209, %s17, 7
      %s211 = smul.addr %s210, 2
      %s212 = smul.addr %s211, 8
      %s213 = scalar_lea.vmem %s4, %s212
      %p214 = pneg %p153
      %p215 = pneg %p150
      %p216 = scmp.lt.s32.totalorder %s17, 7
      %s217 = scalar_select %p216, %s17, 7
      %s218 = smul.addr %s217, 2
      %s219 = smul.addr %s218, 8
      %s220 = scalar_lea.vmem %s5, %s219
      %p221 = scmp.lt.s32.totalorder %s17, 7
      %s222 = scalar_select %p221, %s17, 7
      %s223 = smul.addr %s222, 8
      %s224 = scalar_lea.vmem %s0, %s223
      %p225 = scmp.lt.s32.totalorder %s17, 7
      %s226 = scalar_select %p225, %s17, 7
      %s227 = smul.addr %s226, 2
      %s228 = smul.addr %s227, 8
      %s229 = scalar_lea.vmem %s4, %s228
      %p230 = scmp.lt.s32.totalorder %s17, 7
      %s231 = scalar_select %p230, %s17, 7
      %s232 = smul.addr %s231, 2
      %s233 = smul.addr %s232, 8
      %s234 = scalar_lea.vmem %s5, %s233
      %v235 = vld [vmem:[%s224] sm:$0xff]
      %v236 = vld [vmem:[%s2] sm:$0xff]
      %238 = vset.pattern.permute.xlu0 0
      %239 = vperm.xlu0 %238, %v236
      %v240 = vpop.permute.xlu0 %239
      %v242 = vmul.f32 %v235, %v240
      %v243 = vld [vmem:[%s3] sm:$0xff]
      %245 = vset.pattern.permute.xlu0 0
      %246 = vperm.xlu0 %245, %v243
      %v247 = vpop.permute.xlu0 %246
      %v249 = vadd.f32 %v242, %v247
      %v250 = vmax.f32 %v249, 0.0
      %v251 = vld [vmem:[%s1] sm:$0xff]
      %v252 = vld [vmem:[%s1 + $0x8] sm:$0xff]
      %vm253 = vcmask 64512
      %v255 = vsel %vm253, %v251, 0
      %v258 = vsel %vm253, %v252, 0
      %260 = vmatprep.subr.mxu0 0.0
      %261 = vmatpush1.msra.mxu0 %v250
      %262 = vmatprep.subr.mxu0 0.0
      %263 = vmatpush1.msra.mxu0 0.0
      %264 = vmatprep.subr.mxu0 0.0
      %265 = vmatpush1.msra.mxu0 0.0
      %266 = vmatprep.subr.mxu0 0.0
      %267 = vmatpush1.msra.mxu0 0.0
      %268 = vmatprep.subr.mxu0 0.0
      %269 = vmatpush1.msra.mxu0 0.0
      %270 = vmatprep.subr.mxu0 0.0
      %271 = vmatpush1.msra.mxu0 0.0
      %272 = vmatprep.subr.mxu0 0.0
      %273 = vmatpush1.msra.mxu0 0.0
      %274 = vmatprep.subr.mxu0 0.0
      %275 = vmatpush1.msra.mxu0 0.0
      %276 = vmatprep.subr.mxu0 0.0
      %277 = vmatpush1.msra.mxu0 0.0
      %278 = vmatprep.subr.mxu0 0.0
      %279 = vmatpush1.msra.mxu0 0.0
      %280 = vmatprep.subr.mxu0 0.0
      %281 = vmatpush1.msra.mxu0 0.0
      %282 = vmatprep.subr.mxu0 0.0
      %283 = vmatpush1.msra.mxu0 0.0
      %284 = vmatprep.subr.mxu0 0.0
      %285 = vmatpush1.msra.mxu0 0.0
      %286 = vmatprep.subr.mxu0 0.0
      %287 = vmatpush1.msra.mxu0 0.0
      %288 = vmatprep.subr.mxu0 0.0
      %289 = vmatpush1.msra.mxu0 0.0
      %290 = vmatprep.subr.mxu0 0.0
      %291 = vmatpush1.msra.mxu0 0.0
      %292 = vmatprep.subr.mxu0 0.0
      %293 = vmatpush1.msra.mxu0 0.0
      %294 = vmatprep.subr.mxu0 0.0
      %295 = vmatpush1.msra.mxu0 0.0
      %296 = vmatprep.subr.mxu0 0.0
      %297 = vmatpush1.msra.mxu0 0.0
      %298 = vmatprep.subr.mxu0 0.0
      %299 = vmatpush1.msra.mxu0 0.0
      %300 = vmatprep.subr.mxu0 0.0
      %301 = vmatpush1.msra.mxu0 0.0
      %302 = vmatprep.subr.mxu0 0.0
      %303 = vmatpush1.msra.mxu0 0.0
      %304 = vmatprep.subr.mxu0 0.0
      %305 = vmatpush1.msra.mxu0 0.0
      %306 = vmatprep.subr.mxu0 0.0
      %307 = vmatpush1.msra.mxu0 0.0
      %308 = vmatprep.subr.mxu0 0.0
      %309 = vmatpush1.msra.mxu0 0.0
      %310 = vmatprep.subr.mxu0 0.0
      %311 = vmatpush1.msra.mxu0 0.0
      %312 = vmatprep.subr.mxu0 0.0
      %313 = vmatpush1.msra.mxu0 0.0
      %314 = vmatprep.subr.mxu0 0.0
      %315 = vmatpush1.msra.mxu0 0.0
      %316 = vmatprep.subr.mxu0 0.0
      %317 = vmatpush1.msra.mxu0 0.0
      %318 = vmatprep.subr.mxu0 0.0
      %319 = vmatpush1.msra.mxu0 0.0
      %320 = vmatprep.subr.mxu0 0.0
      %321 = vmatpush1.msra.mxu0 0.0
      %322 = vmatprep.subr.mxu0 0.0
      %323 = vmatpush1.msra.mxu0 0.0
      %324 = vmatprep.mubr.f32.mxu0 0.0
      %325 = vmatmul.mubr.f32.gmra.mrb[0].mxu0 %v255
      %v326 = vpop.f32.mrb[0].mxu0
      %v327 = vadd.f32 0.0, %v326
      %v328 = vpop.f32.mrb[0].mxu0
      %329 = vmatprep.mubr.f32.mxu0 0.0
      %330 = vmatmul.mubr.f32.gmra.mrb[0].mxu0 %v258
      %v331 = vpop.f32.mrb[0].mxu0
      %v332 = vadd.f32 0.0, %v331
      %v333 = vpop.f32.mrb[0].mxu0
      %334 = vdwg.mxu0
      %vm335 = vcmask 523264
      %336 = vst.msk [vmem:[%s229] sm:$0xff] %vm335, %v327
      %337 = vst.msk [vmem:[%s229 + $0x8] sm:$0xff] %vm335, %v332
      %v338 = vsel %vm335, %v327, 0.0
      %339 = vadd.xlane.f32.xlu0 %v338
      %v340 = vpop.xlane.xlu0 %339
      %v341 = vsel %vm335, %v332, 0.0
      %342 = vadd.xlane.f32.xlu0 %v341
      %v343 = vpop.xlane.xlu0 %342
      %v344 = vmul.f32 %v327, %v327
      %v345 = vmul.f32 %v332, %v332
      %v346 = vsel %vm335, %v344, 0.0
      %347 = vadd.xlane.f32.xlu0 %v346
      %v348 = vpop.xlane.xlu0 %347
      %v349 = vsel %vm335, %v345, 0.0
      %350 = vadd.xlane.f32.xlu0 %v349
      %v351 = vpop.xlane.xlu0 %350
      %vm352 = vcmask 7168
      %v353 = vsel %vm352, %v340, %v348
      %v354 = vsel %vm352, %v343, %v351
      %vm355 = vcmask 15360
      %356 = vst.msk [vmem:[%s234] sm:$0xff] %vm355, %v353
      %357 = vst.msk [vmem:[%s234 + $0x8] sm:$0xff] %vm355, %v354
      %p358 = scmp.lt.s32.totalorder %s17, 7
      %s359 = scalar_select %p358, %s17, 7
      %s360 = smul.addr %s359, 2
      %s361 = smul.addr %s360, 8
      %s362 = scalar_lea.vmem %s4, %s361
      %p363 = scmp.lt.s32.totalorder %s17, 7
      %s364 = scalar_select %p363, %s17, 7
      %s365 = smul.addr %s364, 2
      %s366 = smul.addr %s365, 8
      %s367 = scalar_lea.vmem %s5, %s366
      // Predicated region
      $region37: #{residual_identity_block.8} parent=35 // pred_check
        %p368 = pneg %p124
      $region38: #{residual_identity_block.8} parent=35 // pred_check_branch
        %370 = sbr.rel (%p368) target = $region40
      $region39: #{residual_identity_block.8} parent=35 // pred_region
        _
      $region40: #{residual_identity_block.8} parent=35 // pred_fallthru
        _
      // Predicated region
      $region41: #{residual_identity_block.8} parent=35 // pred_check
        %p371 = pneg %p150
      $region42: #{residual_identity_block.8} parent=35 // pred_check_branch
        %373 = sbr.rel (%p371) target = $region44
      $region43: #{residual_identity_block.8} parent=35 // pred_region
        _
      $region44: #{residual_identity_block.8} parent=35 // pred_fallthru
        _
    $region36: #{residual_identity_block.8} parent=5 // pred_fallthru
      _
    %p374 = scmp.le.s32.totalorder 2, %s12
    // Predicated region
    $region45: #{residual_identity_block.8} parent=5 // pred_check
      %p375 = pneg %p374
    $region46: #{residual_identity_block.8} parent=5 // pred_check_branch
      %377 = sbr.rel (%p375) target = $region48
    $region47: #{residual_identity_block.8} parent=5 // pred_region
      %s378 = ssub.s32 %s12, 2
      // Predicated region
      $region49: #{residual_identity_block.8} parent=47 // pred_check
        %p379 = pneg %p130
      $region50: #{residual_identity_block.8} parent=47 // pred_check_branch
        %381 = sbr.rel (%p379) target = $region52
      $region51: #{residual_identity_block.8} parent=47 // pred_region
        %p382 = scmp.lt.s32.totalorder %s18, 7
        %s383 = scalar_select %p382, %s18, 7
        %s384 = smul.addr %s383, 2
        %s385 = smul.addr %s384, 8
        %s386 = scalar_lea.vmem %s4, %s385
      $region52: #{residual_identity_block.8} parent=47 // pred_fallthru
        _
      // Predicated region
      $region53: #{residual_identity_block.8} parent=47 // pred_check
        %p387 = pneg %p156
      $region54: #{residual_identity_block.8} parent=47 // pred_check_branch
        %389 = sbr.rel (%p387) target = $region56
      $region55: #{residual_identity_block.8} parent=47 // pred_region
        %p390 = scmp.lt.s32.totalorder %s18, 7
        %s391 = scalar_select %p390, %s18, 7
        %s392 = smul.addr %s391, 2
        %s393 = smul.addr %s392, 8
        %s394 = scalar_lea.vmem %s5, %s393
      $region56: #{residual_identity_block.8} parent=47 // pred_fallthru
        _
    $region48: #{residual_identity_block.8} parent=5 // pred_fallthru
      _
  $region6: #{residual_identity_block.8} parent=0 // loop_footer
    %s16 = sadd.s32 1, %s12
  $region7: #{residual_identity_block.8} parent=0 // loop_footer_branch
    %11 = sbr.rel target = $region3
  $region8: #{residual_identity_block.8} parent=0 // loop_exit
    _

</llo_original>
